<compile_context>
chip_gen: v7x
topology: tpu7x:2x2x1
jax: 0.10.0
libtpu: 0.0.40
codegen_flags: <defaults>
</compile_context>

<pallas_src>
import jax
import jax.numpy as jnp
import numpy as np
from jax.experimental import pallas as pl
from jax.experimental.pallas import tpu as pltpu

NUM_CARDS = 109
EMBED_DIM = 8
HIDDEN_DIM = 32

K_INT = NUM_CARDS * NUM_CARDS            # 11881 : interaction_layer fan-in
D_EMB = NUM_CARDS * EMBED_DIM            # 872   : flattened embedding length
K_ALL = D_EMB + K_INT                    # 12753 : merged fc1 fan-in (emb ++ interactions)

LANE_FOLD = 128 // HIDDEN_DIM            # 4     : K-chunks packed into the 128-lane dim
_ALIGN = 128 * LANE_FOLD                 # 512   : keeps every chunk lane-aligned
K_ALL_P = ((K_ALL + _ALIGN - 1) // _ALIGN) * _ALIGN   # 12800 (padded fan-in)
K4 = K_ALL_P // LANE_FOLD                # 3200  (multiple of 128)


# ----------------------------- Pallas kernel ------------------------------ #
def cardnet_kernel(x_ref, w_ref, b1_ref, w2_ref, b2_ref, w3_ref, b3_ref, out_ref):
    # x_ref : (LANE_FOLD, K4) f32   -- row j holds activation chunk j
    # w_ref : (K4, 128)      bf16   -- lanes [32j, 32j+32) hold weight chunk j
    x = x_ref[...]
    w = w_ref[...].astype(jnp.float32)                       # weights-only bf16 quant
    y = jnp.dot(x, w, preferred_element_type=jnp.float32)    # (4, 128)

    # z1[c] = sum_j y[j, 32*j + c]  (diagonal 32-lane blocks of the wide dot)
    z1 = b1_ref[...]
    for j in range(LANE_FOLD):
        z1 = z1 + y[j:j + 1, j * HIDDEN_DIM:(j + 1) * HIDDEN_DIM]

    a1 = jnp.maximum(z1, 0.0)                                              # relu (f32)
    z2 = jnp.dot(a1, w2_ref[...], preferred_element_type=jnp.float32) + b2_ref[...]
    a2 = jnp.maximum(z2, 0.0)                                              # relu (f32)
    z3 = jnp.dot(a2, w3_ref[...], preferred_element_type=jnp.float32) + b3_ref[...]
    out_ref[...] = jax.nn.sigmoid(z3)                                      # sigmoid (f32)


# ------------------------------- parameters ------------------------------- #
def init_params(key):
    """Deterministic, PyTorch-like init. Linear weights stored as (in, out)."""
    ks = jax.random.split(key, 5)

    def lin(k, fan_in, fan_out):
        bound = 1.0 / np.sqrt(fan_in)
        kw, kb = jax.random.split(k)
        w = jax.random.uniform(kw, (fan_in, fan_out), jnp.float32, -bound, bound)
        b = jax.random.uniform(kb, (fan_out,), jnp.float32, -bound, bound)
        return w, b

    emb = jax.random.normal(ks[0], (NUM_CARDS * 2, EMBED_DIM), jnp.float32)
    w_int, b_int = lin(ks[1], K_INT, HIDDEN_DIM)
    w1, b1 = lin(ks[2], D_EMB + HIDDEN_DIM, HIDDEN_DIM)
    w2, b2 = lin(ks[3], HIDDEN_DIM, HIDDEN_DIM)
    w3, b3 = lin(ks[4], HIDDEN_DIM, 1)
    return dict(emb=emb, w_int=w_int, b_int=b_int,
                w1=w1, b1=b1, w2=w2, b2=b2, w3=w3, b3=b3)


def pack_params(p):
    """Fold interaction_layer into fc1 and repack the merged weight lane-dense."""
    w1e = p["w1"][:D_EMB]                       # (872, 32) rows for the flattened embedding
    w1i = p["w1"][D_EMB:]                       # (32, 32)  rows for the interaction output
    w_fold = p["w_int"] @ w1i                   # (11881, 32): interaction_layer ∘ fc1 (linear)
    b_fold = p["b_int"] @ w1i + p["b1"]         # (32,)

    w_all = jnp.concatenate(
        [w1e, w_fold,
         jnp.zeros((K_ALL_P - K_ALL, HIDDEN_DIM), jnp.float32)], axis=0)    # (12800, 32)
    # Lane-dense repack: K-chunk j (rows [j*K4, (j+1)*K4)) lands in lanes [32j, 32j+32).
    w_wide = (w_all.reshape(LANE_FOLD, K4, HIDDEN_DIM)
              .transpose(1, 0, 2)
              .reshape(K4, LANE_FOLD * HIDDEN_DIM)
              .astype(jnp.bfloat16))                                         # (3200, 128) bf16

    return (w_wide,
            b_fold.reshape(1, HIDDEN_DIM).astype(jnp.float32),
            p["w2"].astype(jnp.float32),
            p["b2"].reshape(1, HIDDEN_DIM).astype(jnp.float32),
            p["w3"].astype(jnp.float32),
            p["b3"].reshape(1, 1).astype(jnp.float32))


# --------------------------------- wrapper -------------------------------- #
@jax.jit
def card_interaction_net(packed, emb_table, input_vectors, interaction_matrix):
    w_wide, b_fold, w2, b2, w3, b3 = packed

    # Glue (embedding gather + flatten + concat + pad); allow_input_fusion lets
    # XLA pull the cheap tail of this producer chain into the pallas_call.
    emb_flat = emb_table[input_vectors].reshape(1, D_EMB)
    inter_flat = interaction_matrix.reshape(1, K_INT)
    pad = jnp.zeros((1, K_ALL_P - K_ALL), jnp.float32)
    x_all = jnp.concatenate([emb_flat, inter_flat, pad],
                            axis=1).reshape(LANE_FOLD, K4)                   # (4, 3200) f32

    flops = 2 * (LANE_FOLD * K4 * 128 + 2 * HIDDEN_DIM * HIDDEN_DIM + HIDDEN_DIM)
    bytes_accessed = (x_all.size * 4 + w_wide.size * 2
                      + 4 * (b_fold.size + w2.size + b2.size + w3.size + b3.size + 1))

    const = lambda i: (0, 0)
    out = pl.pallas_call(
        cardnet_kernel,
        out_shape=jax.ShapeDtypeStruct((1, 1), jnp.float32),
        grid=(1,),                                       # single step: no K tiling
        in_specs=[
            pl.BlockSpec((LANE_FOLD, K4), const),            # x_all  (f32)
            pl.BlockSpec((K4, LANE_FOLD * HIDDEN_DIM), const),  # w_wide (bf16, lane-dense)
            pl.BlockSpec((1, HIDDEN_DIM), const),            # folded fc1 bias
            pl.BlockSpec((HIDDEN_DIM, HIDDEN_DIM), const),   # w2
            pl.BlockSpec((1, HIDDEN_DIM), const),            # b2
            pl.BlockSpec((HIDDEN_DIM, 1), const),            # w3
            pl.BlockSpec((1, 1), const),                     # b3
        ],
        out_specs=pl.BlockSpec((1, 1), const),
        compiler_params=pltpu.CompilerParams(
            dimension_semantics=("arbitrary",),
            vmem_limit_bytes=8 * 1024 * 1024,                # ~3.6 MiB live -> 2x headroom
            allow_input_fusion=[True, False, False, False, False, False, False]),
        cost_estimate=pl.CostEstimate(flops=flops, transcendentals=1,
                                      bytes_accessed=bytes_accessed),
    )(x_all, w_wide, b_fold, w2, b2, w3, b3)
    return out[0]                       # matches PyTorch output shape (1,)


# --------------------------- pure-JAX reference ---------------------------- #
def reference_forward(p, input_vectors, interaction_matrix):
    emb = p["emb"][input_vectors].reshape(-1)
    inter = interaction_matrix.reshape(-1)
    h_int = inter @ p["w_int"] + p["b_int"]
    combined = jnp.concatenate([emb, h_int])
    x = jax.nn.relu(combined @ p["w1"] + p["b1"])
    x = jax.nn.relu(x @ p["w2"] + p["b2"])
    return jax.nn.sigmoid(x @ p["w3"] + p["b3"])


if __name__ == "__main__":
    key = jax.random.PRNGKey(0)
    k_params, k_idx, k_mat = jax.random.split(key, 3)

    params = init_params(k_params)
    packed = pack_params(params)

    input_vectors = jax.random.randint(
        k_idx, (NUM_CARDS,), 0, NUM_CARDS * 2, dtype=jnp.int32)
    interaction_matrix = jax.random.normal(
        k_mat, (NUM_CARDS, NUM_CARDS), jnp.float32)

    out = card_interaction_net(packed, params["emb"], input_vectors,
                               interaction_matrix)
    out = jax.block_until_ready(out)

    # fp32 reference; bf16 weight storage (activations stay f32) with f32
    # accumulation keeps the sigmoid output within a few 1e-3 absolute.
    ref = reference_forward(params, input_vectors, interaction_matrix)
    np.testing.assert_allclose(np.asarray(out), np.asarray(ref),
                               rtol=2e-2, atol=5e-3)
    print("KERNEL_OK")
</pallas_src>

<mosaic_0001>
module attributes {stable_mosaic.version = 11 : i64} {
  func.func @cardnet_kernel(%arg0: i32, %arg1: memref<4x3200xf32, #tpu.memory_space<vmem>>, %arg2: memref<3200x128xbf16, #tpu.memory_space<vmem>>, %arg3: memref<1x32xf32, #tpu.memory_space<vmem>>, %arg4: memref<32x32xf32, #tpu.memory_space<vmem>>, %arg5: memref<1x32xf32, #tpu.memory_space<vmem>>, %arg6: memref<32x1xf32, #tpu.memory_space<vmem>>, %arg7: memref<1x1xf32, #tpu.memory_space<vmem>>, %arg8: memref<1x1xf32, #tpu.memory_space<vmem>>) attributes {dimension_semantics = [#tpu.dimension_semantics<arbitrary>], iteration_bounds = array<i64: 1>, scalar_prefetch = 0 : i64, scratch_operands = 0 : i64, tpu.core_type = #tpu.core_type<tc>, window_params = [{pipeline_mode = #tpu.pipeline_mode<synchronous>, transform_indices = @transform_0, window_bounds = array<i64: 4, 3200>}, {pipeline_mode = #tpu.pipeline_mode<synchronous>, transform_indices = @transform_1, window_bounds = array<i64: 3200, 128>}, {pipeline_mode = #tpu.pipeline_mode<synchronous>, transform_indices = @transform_2, window_bounds = array<i64: 1, 32>}, {pipeline_mode = #tpu.pipeline_mode<synchronous>, transform_indices = @transform_3, window_bounds = array<i64: 32, 32>}, {pipeline_mode = #tpu.pipeline_mode<synchronous>, transform_indices = @transform_4, window_bounds = array<i64: 1, 32>}, {pipeline_mode = #tpu.pipeline_mode<synchronous>, transform_indices = @transform_5, window_bounds = array<i64: 32, 1>}, {pipeline_mode = #tpu.pipeline_mode<synchronous>, transform_indices = @transform_6, window_bounds = array<i64: 1, 1>}, {pipeline_mode = #tpu.pipeline_mode<synchronous>, transform_indices = @transform_7, window_bounds = array<i64: 1, 1>}]} {
    %c0 = arith.constant 0 : index
    %c0_0 = arith.constant 0 : index
    %0 = vector.load %arg1[%c0, %c0_0] : memref<4x3200xf32, #tpu.memory_space<vmem>>, vector<4x3200xf32>
    %c0_1 = arith.constant 0 : index
    %c0_2 = arith.constant 0 : index
    %1 = vector.load %arg2[%c0_1, %c0_2] : memref<3200x128xbf16, #tpu.memory_space<vmem>>, vector<3200x128xbf16>
    %2 = arith.extf %1 : vector<3200x128xbf16> to vector<3200x128xf32>
    %cst = arith.constant dense<0.000000e+00> : vector<4x128xf32>
    %3 = tpu.matmul %0, %2, %cst {dimension_numbers = #tpu.dot_dimension_numbers<[1], [0], [0], [1], [0, 0, 1, 1], [], []>} : vector<4x3200xf32>, vector<3200x128xf32>, vector<4x128xf32> -> vector<4x128xf32>
    %c0_3 = arith.constant 0 : index
    %c0_4 = arith.constant 0 : index
    %4 = vector.load %arg3[%c0_3, %c0_4] : memref<1x32xf32, #tpu.memory_space<vmem>>, vector<1x32xf32>
    %5 = vector.extract_strided_slice %3 {offsets = [0, 0], sizes = [1, 32], strides = [1, 1]} : vector<4x128xf32> to vector<1x32xf32>
    %6 = arith.addf %4, %5 : vector<1x32xf32>
    %7 = vector.extract_strided_slice %3 {offsets = [1, 32], sizes = [1, 32], strides = [1, 1]} : vector<4x128xf32> to vector<1x32xf32>
    %8 = arith.addf %6, %7 : vector<1x32xf32>
    %9 = vector.extract_strided_slice %3 {offsets = [2, 64], sizes = [1, 32], strides = [1, 1]} : vector<4x128xf32> to vector<1x32xf32>
    %10 = arith.addf %8, %9 : vector<1x32xf32>
    %11 = vector.extract_strided_slice %3 {offsets = [3, 96], sizes = [1, 32], strides = [1, 1]} : vector<4x128xf32> to vector<1x32xf32>
    %12 = arith.addf %10, %11 : vector<1x32xf32>
    %cst_5 = arith.constant 0.000000e+00 : f32
    %13 = vector.broadcast %cst_5 : f32 to vector<1x32xf32>
    %14 = arith.maximumf %12, %13 : vector<1x32xf32>
    %c0_6 = arith.constant 0 : index
    %c0_7 = arith.constant 0 : index
    %15 = vector.load %arg4[%c0_6, %c0_7] : memref<32x32xf32, #tpu.memory_space<vmem>>, vector<32x32xf32>
    %cst_8 = arith.constant dense<0.000000e+00> : vector<1x32xf32>
    %16 = tpu.matmul %14, %15, %cst_8 {dimension_numbers = #tpu.dot_dimension_numbers<[1], [0], [0], [1], [0, 0, 1, 1], [], []>} : vector<1x32xf32>, vector<32x32xf32>, vector<1x32xf32> -> vector<1x32xf32>
    %c0_9 = arith.constant 0 : index
    %c0_10 = arith.constant 0 : index
    %17 = vector.load %arg5[%c0_9, %c0_10] : memref<1x32xf32, #tpu.memory_space<vmem>>, vector<1x32xf32>
    %18 = arith.addf %16, %17 : vector<1x32xf32>
    %cst_11 = arith.constant 0.000000e+00 : f32
    %19 = vector.broadcast %cst_11 : f32 to vector<1x32xf32>
    %20 = arith.maximumf %18, %19 : vector<1x32xf32>
    %c0_12 = arith.constant 0 : index
    %c0_13 = arith.constant 0 : index
    %21 = vector.load %arg6[%c0_12, %c0_13] : memref<32x1xf32, #tpu.memory_space<vmem>>, vector<32x1xf32>
    %cst_14 = arith.constant dense<0.000000e+00> : vector<1x1xf32>
    %22 = tpu.matmul %20, %21, %cst_14 {dimension_numbers = #tpu.dot_dimension_numbers<[1], [0], [0], [1], [0, 0, 1, 1], [], []>} : vector<1x32xf32>, vector<32x1xf32>, vector<1x1xf32> -> vector<1x1xf32>
    %c0_15 = arith.constant 0 : index
    %c0_16 = arith.constant 0 : index
    %23 = vector.load %arg7[%c0_15, %c0_16] : memref<1x1xf32, #tpu.memory_space<vmem>>, vector<1x1xf32>
    %24 = arith.addf %22, %23 : vector<1x1xf32>
    %25 = arith.negf %24 : vector<1x1xf32>
    %26 = math.exp %25 : vector<1x1xf32>
    %cst_17 = arith.constant 1.000000e+00 : f32
    %27 = vector.broadcast %cst_17 : f32 to vector<1x1xf32>
    %28 = arith.addf %27, %26 : vector<1x1xf32>
    %29 = arith.divf %27, %28 : vector<1x1xf32>
    %c0_18 = arith.constant 0 : index
    %c0_19 = arith.constant 0 : index
    %30 = vector.load %arg8[%c0_18, %c0_19] : memref<1x1xf32, #tpu.memory_space<vmem>>, vector<1x1xf32>
    tpu.vector_store %arg8[%c0_18, %c0_19], %29 {strides = array<i32>} : memref<1x1xf32, #tpu.memory_space<vmem>>, vector<1x1xf32>,
    return
  }
  func.func @transform_0(%arg0: i32) -> (i32, i32) {
    %c0_i32 = arith.constant 0 : i32
    %c0_i32_0 = arith.constant 0 : i32
    %c0_i32_1 = arith.constant 0 : i32
    return %c0_i32, %c0_i32_0 : i32, i32
  }
  func.func @transform_1(%arg0: i32) -> (i32, i32) {
    %c0_i32 = arith.constant 0 : i32
    %c0_i32_0 = arith.constant 0 : i32
    %c0_i32_1 = arith.constant 0 : i32
    return %c0_i32, %c0_i32_0 : i32, i32
  }
  func.func @transform_2(%arg0: i32) -> (i32, i32) {
    %c0_i32 = arith.constant 0 : i32
    %c0_i32_0 = arith.constant 0 : i32
    %c0_i32_1 = arith.constant 0 : i32
    return %c0_i32, %c0_i32_0 : i32, i32
  }
  func.func @transform_3(%arg0: i32) -> (i32, i32) {
    %c0_i32 = arith.constant 0 : i32
    %c0_i32_0 = arith.constant 0 : i32
    %c0_i32_1 = arith.constant 0 : i32
    return %c0_i32, %c0_i32_0 : i32, i32
  }
  func.func @transform_4(%arg0: i32) -> (i32, i32) {
    %c0_i32 = arith.constant 0 : i32
    %c0_i32_0 = arith.constant 0 : i32
    %c0_i32_1 = arith.constant 0 : i32
    return %c0_i32, %c0_i32_0 : i32, i32
  }
  func.func @transform_5(%arg0: i32) -> (i32, i32) {
    %c0_i32 = arith.constant 0 : i32
    %c0_i32_0 = arith.constant 0 : i32
    %c0_i32_1 = arith.constant 0 : i32
    return %c0_i32, %c0_i32_0 : i32, i32
  }
  func.func @transform_6(%arg0: i32) -> (i32, i32) {
    %c0_i32 = arith.constant 0 : i32
    %c0_i32_0 = arith.constant 0 : i32
    %c0_i32_1 = arith.constant 0 : i32
    return %c0_i32, %c0_i32_0 : i32, i32
  }
  func.func @transform_7(%arg0: i32) -> (i32, i32) {
    %c0_i32 = arith.constant 0 : i32
    %c0_i32_0 = arith.constant 0 : i32
    %c0_i32_1 = arith.constant 0 : i32
    return %c0_i32, %c0_i32_0 : i32, i32
  }
}

</mosaic_0001>

<llo_original>
// kernel: card_interaction_net.1
$region0: #{card_interaction_net.1}
  #allocation0 [shape = 'u32[]', space=smem, size = 0x4, offset = 0x4, fixed_abs, tag = 'smem constant byte address 0x4 - core index']
  #allocation1 [shape = 'u32[144,128]{1,0:T(1,128)}', space=vmem, size = 0x12000, scoped, tag = 'internal scratch']
  #allocation2 [shape = 'f32[1,1]{1,0:T(1,128)S(1)}', space=vmem, size = 0x200, scoped, tag = 'scoped memory for card_interaction_net.1']
  %s0 = inlined_call_operand.vmem [shape: f32[4,3200], index: 0, kind: input, shape index: {}]
  %s1 = inlined_call_operand.vmem [shape: bf16[3200,128], index: 1, kind: input, shape index: {}]
  %s2 = inlined_call_operand.vmem [shape: f32[1,32], index: 2, kind: input, shape index: {}]
  %s3 = inlined_call_operand.vmem [shape: f32[32,32], index: 3, kind: input, shape index: {}]
  %s4 = inlined_call_operand.vmem [shape: f32[1,32], index: 4, kind: input, shape index: {}]
  %s5 = inlined_call_operand.vmem [shape: f32[32,1], index: 5, kind: input, shape index: {}]
  %s6 = inlined_call_operand.<no memory space> [shape: f32[1,1], index: 6, kind: input, shape index: {}]
  %s7 = inlined_call_operand.hbm [shape: f32[1,1], index: 7, kind: output, shape index: {}]
  %s8 = sld [smem:[#allocation0]]
  $region38: #{card_interaction_net.1} parent=0
    _
  %s10 = ssub.s32 1, %s8
  %s11 = scalar_select 0, %s10, %s8
  %v12 = vstv %s6
  %13 = vst [vmem:[#allocation2] sm:$0x1] %v12
  $region1: #{card_interaction_net.1} parent=0
    #allocation3 [shape = 'u8[512]{0}', space=vmem, size = 0x400, scoped, tag = 'output window, operand 0, single buffered']
    #allocation4 [shape = 's32[1]{0}', space=sflag, size = 0x4, scoped, tag = 'scoped memory for card_interaction_net.1']
    %14 = vsyncpa [#allocation4], 0
    // Predicated region
    $region2: #{card_interaction_net.1} parent=1 // pred_check
      _
    $region3: #{card_interaction_net.1} parent=1 // pred_check_branch
      %16 = sbr.rel (0) target = $region5
    $region4: #{card_interaction_net.1} parent=1 // pred_region
      _
    $region5: #{card_interaction_net.1} parent=1 // pred_fallthru
      _
    // Predicated region
    $region6: #{card_interaction_net.1} parent=1 // pred_check
      _
    $region7: #{card_interaction_net.1} parent=1 // pred_check_branch
      %18 = sbr.rel (0) target = $region9
    $region8: #{card_interaction_net.1} parent=1 // pred_region
      _
    $region9: #{card_interaction_net.1} parent=1 // pred_fallthru
      _
    // Predicated region
    $region10: #{card_interaction_net.1} parent=1 // pred_check
      _
    $region11: #{card_interaction_net.1} parent=1 // pred_check_branch
      %20 = sbr.rel (0) target = $region13
    $region12: #{card_interaction_net.1} parent=1 // pred_region
      _
    $region13: #{card_interaction_net.1} parent=1 // pred_fallthru
      _
    // Predicated region
    $region14: #{card_interaction_net.1} parent=1 // pred_check
      _
    $region15: #{card_interaction_net.1} parent=1 // pred_check_branch
      %22 = sbr.rel (0) target = $region17
    $region16: #{card_interaction_net.1} parent=1 // pred_region
      _
    $region17: #{card_interaction_net.1} parent=1 // pred_fallthru
      _
    // Predicated region
    $region18: #{card_interaction_net.1} parent=1 // pred_check
      _
    $region19: #{card_interaction_net.1} parent=1 // pred_check_branch
      %24 = sbr.rel (0) target = $region21
    $region20: #{card_interaction_net.1} parent=1 // pred_region
      _
    $region21: #{card_interaction_net.1} parent=1 // pred_fallthru
      _
    // Predicated region
    $region22: #{card_interaction_net.1} parent=1 // pred_check
      _
    $region23: #{card_interaction_net.1} parent=1 // pred_check_branch
      %26 = sbr.rel (0) target = $region25
    $region24: #{card_interaction_net.1} parent=1 // pred_region
      _
    $region25: #{card_interaction_net.1} parent=1 // pred_fallthru
      _
    // Predicated region
    $region26: #{card_interaction_net.1} parent=1 // pred_check
      _
    $region27: #{card_interaction_net.1} parent=1 // pred_check_branch
      %28 = sbr.rel (0) target = $region29
    $region28: #{card_interaction_net.1} parent=1 // pred_region
      _
    $region29: #{card_interaction_net.1} parent=1 // pred_fallthru
      _
    %v29 = vld [vmem:[%s0] sm:$0xff]
    %v30 = vld [vmem:[%s0 + $0x8] sm:$0xff]
    %v31 = vld [vmem:[%s0 + $0x10] sm:$0xff]
    %v32 = vld [vmem:[%s0 + $0x18] sm:$0xff]
    %v33 = vld [vmem:[%s0 + $0x20] sm:$0xff]
    %v34 = vld [vmem:[%s0 + $0x28] sm:$0xff]
    %v35 = vld [vmem:[%s0 + $0x30] sm:$0xff]
    %v36 = vld [vmem:[%s0 + $0x38] sm:$0xff]
    %v37 = vld [vmem:[%s0 + $0x40] sm:$0xff]
    %v38 = vld [vmem:[%s0 + $0x48] sm:$0xff]
    %v39 = vld [vmem:[%s0 + $0x50] sm:$0xff]
    %v40 = vld [vmem:[%s0 + $0x58] sm:$0xff]
    %v41 = vld [vmem:[%s0 + $0x60] sm:$0xf]
    %v42 = vld [vmem:[%s1] sm:$0xf]
    %v43 = vld [vmem:[%s1 + $0x4] sm:$0xf]
    %v44 = vld [vmem:[%s1 + $0x8] sm:$0xf]
    %v45 = vld [vmem:[%s1 + $0xc] sm:$0xf]
    %v46 = vld [vmem:[%s1 + $0x10] sm:$0xf]
    %v47 = vld [vmem:[%s1 + $0x14] sm:$0xf]
    %v48 = vld [vmem:[%s1 + $0x18] sm:$0xf]
    %v49 = vld [vmem:[%s1 + $0x1c] sm:$0xf]
    %v50 = vld [vmem:[%s1 + $0x20] sm:$0xf]
    %v51 = vld [vmem:[%s1 + $0x24] sm:$0xf]
    %v52 = vld [vmem:[%s1 + $0x28] sm:$0xf]
    %v53 = vld [vmem:[%s1 + $0x2c] sm:$0xf]
    %v54 = vld [vmem:[%s1 + $0x30] sm:$0xf]
    %v55 = vld [vmem:[%s1 + $0x34] sm:$0xf]
    %v56 = vld [vmem:[%s1 + $0x38] sm:$0xf]
    %v57 = vld [vmem:[%s1 + $0x3c] sm:$0xf]
    %v58 = vld [vmem:[%s1 + $0x40] sm:$0xf]
    %v59 = vld [vmem:[%s1 + $0x44] sm:$0xf]
    %v60 = vld [vmem:[%s1 + $0x48] sm:$0xf]
    %v61 = vld [vmem:[%s1 + $0x4c] sm:$0xf]
    %v62 = vld [vmem:[%s1 + $0x50] sm:$0xf]
    %v63 = vld [vmem:[%s1 + $0x54] sm:$0xf]
    %v64 = vld [vmem:[%s1 + $0x58] sm:$0xf]
    %v65 = vld [vmem:[%s1 + $0x5c] sm:$0xf]
    %v66 = vld [vmem:[%s1 + $0x60] sm:$0xf]
    %v67 = vld [vmem:[%s1 + $0x64] sm:$0xf]
    %v68 = vld [vmem:[%s1 + $0x68] sm:$0xf]
    %v69 = vld [vmem:[%s1 + $0x6c] sm:$0xf]
    %v70 = vld [vmem:[%s1 + $0x70] sm:$0xf]
    %v71 = vld [vmem:[%s1 + $0x74] sm:$0xf]
    %v72 = vld [vmem:[%s1 + $0x78] sm:$0xf]
    %v73 = vld [vmem:[%s1 + $0x7c] sm:$0xf]
    %v74 = vld [vmem:[%s1 + $0x80] sm:$0xf]
    %v75 = vld [vmem:[%s1 + $0x84] sm:$0xf]
    %v76 = vld [vmem:[%s1 + $0x88] sm:$0xf]
    %v77 = vld [vmem:[%s1 + $0x8c] sm:$0xf]
    %v78 = vld [vmem:[%s1 + $0x90] sm:$0xf]
    %v79 = vld [vmem:[%s1 + $0x94] sm:$0xf]
    %v80 = vld [vmem:[%s1 + $0x98] sm:$0xf]
    %v81 = vld [vmem:[%s1 + $0x9c] sm:$0xf]
    %v82 = vld [vmem:[%s1 + $0xa0] sm:$0xf]
    %v83 = vld [vmem:[%s1 + $0xa4] sm:$0xf]
    %v84 = vld [vmem:[%s1 + $0xa8] sm:$0xf]
    %v85 = vld [vmem:[%s1 + $0xac] sm:$0xf]
    %v86 = vld [vmem:[%s1 + $0xb0] sm:$0xf]
    %v87 = vld [vmem:[%s1 + $0xb4] sm:$0xf]
    %v88 = vld [vmem:[%s1 + $0xb8] sm:$0xf]
    %v89 = vld [vmem:[%s1 + $0xbc] sm:$0xf]
    %v90 = vld [vmem:[%s1 + $0xc0] sm:$0xf]
    %v91 = vld [vmem:[%s1 + $0xc4] sm:$0xf]
    %v92 = vld [vmem:[%s1 + $0xc8] sm:$0xf]
    %v93 = vld [vmem:[%s1 + $0xcc] sm:$0xf]
    %v94 = vld [vmem:[%s1 + $0xd0] sm:$0xf]
    %v95 = vld [vmem:[%s1 + $0xd4] sm:$0xf]
    %v96 = vld [vmem:[%s1 + $0xd8] sm:$0xf]
    %v97 = vld [vmem:[%s1 + $0xdc] sm:$0xf]
    %v98 = vld [vmem:[%s1 + $0xe0] sm:$0xf]
    %v99 = vld [vmem:[%s1 + $0xe4] sm:$0xf]
    %v100 = vld [vmem:[%s1 + $0xe8] sm:$0xf]
    %v101 = vld [vmem:[%s1 + $0xec] sm:$0xf]
    %v102 = vld [vmem:[%s1 + $0xf0] sm:$0xf]
    %v103 = vld [vmem:[%s1 + $0xf4] sm:$0xf]
    %v104 = vld [vmem:[%s1 + $0xf8] sm:$0xf]
    %v105 = vld [vmem:[%s1 + $0xfc] sm:$0xf]
    %v106 = vld [vmem:[%s1 + $0x100] sm:$0xf]
    %v107 = vld [vmem:[%s1 + $0x104] sm:$0xf]
    %v108 = vld [vmem:[%s1 + $0x108] sm:$0xf]
    %v109 = vld [vmem:[%s1 + $0x10c] sm:$0xf]
    %v110 = vld [vmem:[%s1 + $0x110] sm:$0xf]
    %v111 = vld [vmem:[%s1 + $0x114] sm:$0xf]
    %v112 = vld [vmem:[%s1 + $0x118] sm:$0xf]
    %v113 = vld [vmem:[%s1 + $0x11c] sm:$0xf]
    %v114 = vld [vmem:[%s1 + $0x120] sm:$0xf]
    %v115 = vld [vmem:[%s1 + $0x124] sm:$0xf]
    %v116 = vld [vmem:[%s1 + $0x128] sm:$0xf]
    %v117 = vld [vmem:[%s1 + $0x12c] sm:$0xf]
    %v118 = vld [vmem:[%s1 + $0x130] sm:$0xf]
    %v119 = vld [vmem:[%s1 + $0x134] sm:$0xf]
    %v120 = vld [vmem:[%s1 + $0x138] sm:$0xf]
    %v121 = vld [vmem:[%s1 + $0x13c] sm:$0xf]
    %v122 = vld [vmem:[%s1 + $0x140] sm:$0xf]
    %v123 = vld [vmem:[%s1 + $0x144] sm:$0xf]
    %v124 = vld [vmem:[%s1 + $0x148] sm:$0xf]
    %v125 = vld [vmem:[%s1 + $0x14c] sm:$0xf]
    %v126 = vld [vmem:[%s1 + $0x150] sm:$0xf]
    %v127 = vld [vmem:[%s1 + $0x154] sm:$0xf]
    %v128 = vld [vmem:[%s1 + $0x158] sm:$0xf]
    %v129 = vld [vmem:[%s1 + $0x15c] sm:$0xf]
    %v130 = vld [vmem:[%s1 + $0x160] sm:$0xf]
    %v131 = vld [vmem:[%s1 + $0x164] sm:$0xf]
    %v132 = vld [vmem:[%s1 + $0x168] sm:$0xf]
    %v133 = vld [vmem:[%s1 + $0x16c] sm:$0xf]
    %v134 = vld [vmem:[%s1 + $0x170] sm:$0xf]
    %v135 = vld [vmem:[%s1 + $0x174] sm:$0xf]
    %v136 = vld [vmem:[%s1 + $0x178] sm:$0xf]
    %v137 = vld [vmem:[%s1 + $0x17c] sm:$0xf]
    %v138 = vld [vmem:[%s1 + $0x180] sm:$0xf]
    %v139 = vld [vmem:[%s1 + $0x184] sm:$0xf]
    %v140 = vld [vmem:[%s1 + $0x188] sm:$0xf]
    %v141 = vld [vmem:[%s1 + $0x18c] sm:$0xf]
    %v142 = vld [vmem:[%s1 + $0x190] sm:$0xf]
    %v143 = vld [vmem:[%s1 + $0x194] sm:$0xf]
    %v144 = vld [vmem:[%s1 + $0x198] sm:$0xf]
    %v145 = vld [vmem:[%s1 + $0x19c] sm:$0xf]
    %v146 = vld [vmem:[%s1 + $0x1a0] sm:$0xf]
    %v147 = vld [vmem:[%s1 + $0x1a4] sm:$0xf]
    %v148 = vld [vmem:[%s1 + $0x1a8] sm:$0xf]
    %v149 = vld [vmem:[%s1 + $0x1ac] sm:$0xf]
    %v150 = vld [vmem:[%s1 + $0x1b0] sm:$0xf]
    %v151 = vld [vmem:[%s1 + $0x1b4] sm:$0xf]
    %v152 = vld [vmem:[%s1 + $0x1b8] sm:$0xf]
    %v153 = vld [vmem:[%s1 + $0x1bc] sm:$0xf]
    %v154 = vld [vmem:[%s1 + $0x1c0] sm:$0xf]
    %v155 = vld [vmem:[%s1 + $0x1c4] sm:$0xf]
    %v156 = vld [vmem:[%s1 + $0x1c8] sm:$0xf]
    %v157 = vld [vmem:[%s1 + $0x1cc] sm:$0xf]
    %v158 = vld [vmem:[%s1 + $0x1d0] sm:$0xf]
    %v159 = vld [vmem:[%s1 + $0x1d4] sm:$0xf]
    %v160 = vld [vmem:[%s1 + $0x1d8] sm:$0xf]
    %v161 = vld [vmem:[%s1 + $0x1dc] sm:$0xf]
    %v162 = vld [vmem:[%s1 + $0x1e0] sm:$0xf]
    %v163 = vld [vmem:[%s1 + $0x1e4] sm:$0xf]
    %v164 = vld [vmem:[%s1 + $0x1e8] sm:$0xf]
    %v165 = vld [vmem:[%s1 + $0x1ec] sm:$0xf]
    %v166 = vld [vmem:[%s1 + $0x1f0] sm:$0xf]
    %v167 = vld [vmem:[%s1 + $0x1f4] sm:$0xf]
    %v168 = vld [vmem:[%s1 + $0x1f8] sm:$0xf]
    %v169 = vld [vmem:[%s1 + $0x1fc] sm:$0xf]
    %v170 = vld [vmem:[%s1 + $0x200] sm:$0xf]
    %v171 = vld [vmem:[%s1 + $0x204] sm:$0xf]
    %v172 = vld [vmem:[%s1 + $0x208] sm:$0xf]
    %v173 = vld [vmem:[%s1 + $0x20c] sm:$0xf]
    %v174 = vld [vmem:[%s1 + $0x210] sm:$0xf]
    %v175 = vld [vmem:[%s1 + $0x214] sm:$0xf]
    %v176 = vld [vmem:[%s1 + $0x218] sm:$0xf]
    %v177 = vld [vmem:[%s1 + $0x21c] sm:$0xf]
    %v178 = vld [vmem:[%s1 + $0x220] sm:$0xf]
    %v179 = vld [vmem:[%s1 + $0x224] sm:$0xf]
    %v180 = vld [vmem:[%s1 + $0x228] sm:$0xf]
    %v181 = vld [vmem:[%s1 + $0x22c] sm:$0xf]
    %v182 = vld [vmem:[%s1 + $0x230] sm:$0xf]
    %v183 = vld [vmem:[%s1 + $0x234] sm:$0xf]
    %v184 = vld [vmem:[%s1 + $0x238] sm:$0xf]
    %v185 = vld [vmem:[%s1 + $0x23c] sm:$0xf]
    %v186 = vld [vmem:[%s1 + $0x240] sm:$0xf]
    %v187 = vld [vmem:[%s1 + $0x244] sm:$0xf]
    %v188 = vld [vmem:[%s1 + $0x248] sm:$0xf]
    %v189 = vld [vmem:[%s1 + $0x24c] sm:$0xf]
    %v190 = vld [vmem:[%s1 + $0x250] sm:$0xf]
    %v191 = vld [vmem:[%s1 + $0x254] sm:$0xf]
    %v192 = vld [vmem:[%s1 + $0x258] sm:$0xf]
    %v193 = vld [vmem:[%s1 + $0x25c] sm:$0xf]
    %v194 = vld [vmem:[%s1 + $0x260] sm:$0xf]
    %v195 = vld [vmem:[%s1 + $0x264] sm:$0xf]
    %v196 = vld [vmem:[%s1 + $0x268] sm:$0xf]
    %v197 = vld [vmem:[%s1 + $0x26c] sm:$0xf]
    %v198 = vld [vmem:[%s1 + $0x270] sm:$0xf]
    %v199 = vld [vmem:[%s1 + $0x274] sm:$0xf]
    %v200 = vld [vmem:[%s1 + $0x278] sm:$0xf]
    %v201 = vld [vmem:[%s1 + $0x27c] sm:$0xf]
    %v202 = vld [vmem:[%s1 + $0x280] sm:$0xf]
    %v203 = vld [vmem:[%s1 + $0x284] sm:$0xf]
    %v204 = vld [vmem:[%s1 + $0x288] sm:$0xf]
    %v205 = vld [vmem:[%s1 + $0x28c] sm:$0xf]
    %v206 = vld [vmem:[%s1 + $0x290] sm:$0xf]
    %v207 = vld [vmem:[%s1 + $0x294] sm:$0xf]
    %v208 = vld [vmem:[%s1 + $0x298] sm:$0xf]
    %v209 = vld [vmem:[%s1 + $0x29c] sm:$0xf]
    %v210 = vld [vmem:[%s1 + $0x2a0] sm:$0xf]
    %v211 = vld [vmem:[%s1 + $0x2a4] sm:$0xf]
    %v212 = vld [vmem:[%s1 + $0x2a8] sm:$0xf]
    %v213 = vld [vmem:[%s1 + $0x2ac] sm:$0xf]
    %v214 = vld [vmem:[%s1 + $0x2b0] sm:$0xf]
    %v215 = vld [vmem:[%s1 + $0x2b4] sm:$0xf]
    %v216 = vld [vmem:[%s1 + $0x2b8] sm:$0xf]
    %v217 = vld [vmem:[%s1 + $0x2bc] sm:$0xf]
    %v218 = vld [vmem:[%s1 + $0x2c0] sm:$0xf]
    %v219 = vld [vmem:[%s1 + $0x2c4] sm:$0xf]
    %v220 = vld [vmem:[%s1 + $0x2c8] sm:$0xf]
    %v221 = vld [vmem:[%s1 + $0x2cc] sm:$0xf]
    %v222 = vld [vmem:[%s1 + $0x2d0] sm:$0xf]
    %v223 = vld [vmem:[%s1 + $0x2d4] sm:$0xf]
    %v224 = vld [vmem:[%s1 + $0x2d8] sm:$0xf]
    %v225 = vld [vmem:[%s1 + $0x2dc] sm:$0xf]
    %v226 = vld [vmem:[%s1 + $0x2e0] sm:$0xf]
    %v227 = vld [vmem:[%s1 + $0x2e4] sm:$0xf]
    %v228 = vld [vmem:[%s1 + $0x2e8] sm:$0xf]
    %v229 = vld [vmem:[%s1 + $0x2ec] sm:$0xf]
    %v230 = vld [vmem:[%s1 + $0x2f0] sm:$0xf]
    %v231 = vld [vmem:[%s1 + $0x2f4] sm:$0xf]
    %v232 = vld [vmem:[%s1 + $0x2f8] sm:$0xf]
    %v233 = vld [vmem:[%s1 + $0x2fc] sm:$0xf]
    %v234 = vld [vmem:[%s1 + $0x300] sm:$0xf]
    %v235 = vld [vmem:[%s1 + $0x304] sm:$0xf]
    %v236 = vld [vmem:[%s1 + $0x308] sm:$0xf]
    %v237 = vld [vmem:[%s1 + $0x30c] sm:$0xf]
    %v238 = vld [vmem:[%s1 + $0x310] sm:$0xf]
    %v239 = vld [vmem:[%s1 + $0x314] sm:$0xf]
    %v240 = vld [vmem:[%s1 + $0x318] sm:$0xf]
    %v241 = vld [vmem:[%s1 + $0x31c] sm:$0xf]
    %v242 = vld [vmem:[%s1 + $0x320] sm:$0xf]
    %v243 = vld [vmem:[%s1 + $0x324] sm:$0xf]
    %v244 = vld [vmem:[%s1 + $0x328] sm:$0xf]
    %v245 = vld [vmem:[%s1 + $0x32c] sm:$0xf]
    %v246 = vld [vmem:[%s1 + $0x330] sm:$0xf]
    %v247 = vld [vmem:[%s1 + $0x334] sm:$0xf]
    %v248 = vld [vmem:[%s1 + $0x338] sm:$0xf]
    %v249 = vld [vmem:[%s1 + $0x33c] sm:$0xf]
    %v250 = vld [vmem:[%s1 + $0x340] sm:$0xf]
    %v251 = vld [vmem:[%s1 + $0x344] sm:$0xf]
    %v252 = vld [vmem:[%s1 + $0x348] sm:$0xf]
    %v253 = vld [vmem:[%s1 + $0x34c] sm:$0xf]
    %v254 = vld [vmem:[%s1 + $0x350] sm:$0xf]
    %v255 = vld [vmem:[%s1 + $0x354] sm:$0xf]
    %v256 = vld [vmem:[%s1 + $0x358] sm:$0xf]
    %v257 = vld [vmem:[%s1 + $0x35c] sm:$0xf]
    %v258 = vld [vmem:[%s1 + $0x360] sm:$0xf]
    %v259 = vld [vmem:[%s1 + $0x364] sm:$0xf]
    %v260 = vld [vmem:[%s1 + $0x368] sm:$0xf]
    %v261 = vld [vmem:[%s1 + $0x36c] sm:$0xf]
    %v262 = vld [vmem:[%s1 + $0x370] sm:$0xf]
    %v263 = vld [vmem:[%s1 + $0x374] sm:$0xf]
    %v264 = vld [vmem:[%s1 + $0x378] sm:$0xf]
    %v265 = vld [vmem:[%s1 + $0x37c] sm:$0xf]
    %v266 = vld [vmem:[%s1 + $0x380] sm:$0xf]
    %v267 = vld [vmem:[%s1 + $0x384] sm:$0xf]
    %v268 = vld [vmem:[%s1 + $0x388] sm:$0xf]
    %v269 = vld [vmem:[%s1 + $0x38c] sm:$0xf]
    %v270 = vld [vmem:[%s1 + $0x390] sm:$0xf]
    %v271 = vld [vmem:[%s1 + $0x394] sm:$0xf]
    %v272 = vld [vmem:[%s1 + $0x398] sm:$0xf]
    %v273 = vld [vmem:[%s1 + $0x39c] sm:$0xf]
    %v274 = vld [vmem:[%s1 + $0x3a0] sm:$0xf]
    %v275 = vld [vmem:[%s1 + $0x3a4] sm:$0xf]
    %v276 = vld [vmem:[%s1 + $0x3a8] sm:$0xf]
    %v277 = vld [vmem:[%s1 + $0x3ac] sm:$0xf]
    %v278 = vld [vmem:[%s1 + $0x3b0] sm:$0xf]
    %v279 = vld [vmem:[%s1 + $0x3b4] sm:$0xf]
    %v280 = vld [vmem:[%s1 + $0x3b8] sm:$0xf]
    %v281 = vld [vmem:[%s1 + $0x3bc] sm:$0xf]
    %v282 = vld [vmem:[%s1 + $0x3c0] sm:$0xf]
    %v283 = vld [vmem:[%s1 + $0x3c4] sm:$0xf]
    %v284 = vld [vmem:[%s1 + $0x3c8] sm:$0xf]
    %v285 = vld [vmem:[%s1 + $0x3cc] sm:$0xf]
    %v286 = vld [vmem:[%s1 + $0x3d0] sm:$0xf]
    %v287 = vld [vmem:[%s1 + $0x3d4] sm:$0xf]
    %v288 = vld [vmem:[%s1 + $0x3d8] sm:$0xf]
    %v289 = vld [vmem:[%s1 + $0x3dc] sm:$0xf]
    %v290 = vld [vmem:[%s1 + $0x3e0] sm:$0xf]
    %v291 = vld [vmem:[%s1 + $0x3e4] sm:$0xf]
    %v292 = vld [vmem:[%s1 + $0x3e8] sm:$0xf]
    %v293 = vld [vmem:[%s1 + $0x3ec] sm:$0xf]
    %v294 = vld [vmem:[%s1 + $0x3f0] sm:$0xf]
    %v295 = vld [vmem:[%s1 + $0x3f4] sm:$0xf]
    %v296 = vld [vmem:[%s1 + $0x3f8] sm:$0xf]
    %v297 = vld [vmem:[%s1 + $0x3fc] sm:$0xf]
    %v298 = vld [vmem:[%s1 + $0x400] sm:$0xf]
    %v299 = vld [vmem:[%s1 + $0x404] sm:$0xf]
    %v300 = vld [vmem:[%s1 + $0x408] sm:$0xf]
    %v301 = vld [vmem:[%s1 + $0x40c] sm:$0xf]
    %v302 = vld [vmem:[%s1 + $0x410] sm:$0xf]
    %v303 = vld [vmem:[%s1 + $0x414] sm:$0xf]
    %v304 = vld [vmem:[%s1 + $0x418] sm:$0xf]
    %v305 = vld [vmem:[%s1 + $0x41c] sm:$0xf]
    %v306 = vld [vmem:[%s1 + $0x420] sm:$0xf]
    %v307 = vld [vmem:[%s1 + $0x424] sm:$0xf]
    %v308 = vld [vmem:[%s1 + $0x428] sm:$0xf]
    %v309 = vld [vmem:[%s1 + $0x42c] sm:$0xf]
    %v310 = vld [vmem:[%s1 + $0x430] sm:$0xf]
    %v311 = vld [vmem:[%s1 + $0x434] sm:$0xf]
    %v312 = vld [vmem:[%s1 + $0x438] sm:$0xf]
    %v313 = vld [vmem:[%s1 + $0x43c] sm:$0xf]
    %v314 = vld [vmem:[%s1 + $0x440] sm:$0xf]
    %v315 = vld [vmem:[%s1 + $0x444] sm:$0xf]
    %v316 = vld [vmem:[%s1 + $0x448] sm:$0xf]
    %v317 = vld [vmem:[%s1 + $0x44c] sm:$0xf]
    %v318 = vld [vmem:[%s1 + $0x450] sm:$0xf]
    %v319 = vld [vmem:[%s1 + $0x454] sm:$0xf]
    %v320 = vld [vmem:[%s1 + $0x458] sm:$0xf]
    %v321 = vld [vmem:[%s1 + $0x45c] sm:$0xf]
    %v322 = vld [vmem:[%s1 + $0x460] sm:$0xf]
    %v323 = vld [vmem:[%s1 + $0x464] sm:$0xf]
    %v324 = vld [vmem:[%s1 + $0x468] sm:$0xf]
    %v325 = vld [vmem:[%s1 + $0x46c] sm:$0xf]
    %v326 = vld [vmem:[%s1 + $0x470] sm:$0xf]
    %v327 = vld [vmem:[%s1 + $0x474] sm:$0xf]
    %v328 = vld [vmem:[%s1 + $0x478] sm:$0xf]
    %v329 = vld [vmem:[%s1 + $0x47c] sm:$0xf]
    %v330 = vld [vmem:[%s1 + $0x480] sm:$0xf]
    %v331 = vld [vmem:[%s1 + $0x484] sm:$0xf]
    %v332 = vld [vmem:[%s1 + $0x488] sm:$0xf]
    %v333 = vld [vmem:[%s1 + $0x48c] sm:$0xf]
    %v334 = vld [vmem:[%s1 + $0x490] sm:$0xf]
    %v335 = vld [vmem:[%s1 + $0x494] sm:$0xf]
    %v336 = vld [vmem:[%s1 + $0x498] sm:$0xf]
    %v337 = vld [vmem:[%s1 + $0x49c] sm:$0xf]
    %v338 = vld [vmem:[%s1 + $0x4a0] sm:$0xf]
    %v339 = vld [vmem:[%s1 + $0x4a4] sm:$0xf]
    %v340 = vld [vmem:[%s1 + $0x4a8] sm:$0xf]
    %v341 = vld [vmem:[%s1 + $0x4ac] sm:$0xf]
    %v342 = vld [vmem:[%s1 + $0x4b0] sm:$0xf]
    %v343 = vld [vmem:[%s1 + $0x4b4] sm:$0xf]
    %v344 = vld [vmem:[%s1 + $0x4b8] sm:$0xf]
    %v345 = vld [vmem:[%s1 + $0x4bc] sm:$0xf]
    %v346 = vld [vmem:[%s1 + $0x4c0] sm:$0xf]
    %v347 = vld [vmem:[%s1 + $0x4c4] sm:$0xf]
    %v348 = vld [vmem:[%s1 + $0x4c8] sm:$0xf]
    %v349 = vld [vmem:[%s1 + $0x4cc] sm:$0xf]
    %v350 = vld [vmem:[%s1 + $0x4d0] sm:$0xf]
    %v351 = vld [vmem:[%s1 + $0x4d4] sm:$0xf]
    %v352 = vld [vmem:[%s1 + $0x4d8] sm:$0xf]
    %v353 = vld [vmem:[%s1 + $0x4dc] sm:$0xf]
    %v354 = vld [vmem:[%s1 + $0x4e0] sm:$0xf]
    %v355 = vld [vmem:[%s1 + $0x4e4] sm:$0xf]
    %v356 = vld [vmem:[%s1 + $0x4e8] sm:$0xf]
    %v357 = vld [vmem:[%s1 + $0x4ec] sm:$0xf]
    %v358 = vld [vmem:[%s1 + $0x4f0] sm:$0xf]
    %v359 = vld [vmem:[%s1 + $0x4f4] sm:$0xf]
    %v360 = vld [vmem:[%s1 + $0x4f8] sm:$0xf]
    %v361 = vld [vmem:[%s1 + $0x4fc] sm:$0xf]
    %v362 = vld [vmem:[%s1 + $0x500] sm:$0xf]
    %v363 = vld [vmem:[%s1 + $0x504] sm:$0xf]
    %v364 = vld [vmem:[%s1 + $0x508] sm:$0xf]
    %v365 = vld [vmem:[%s1 + $0x50c] sm:$0xf]
    %v366 = vld [vmem:[%s1 + $0x510] sm:$0xf]
    %v367 = vld [vmem:[%s1 + $0x514] sm:$0xf]
    %v368 = vld [vmem:[%s1 + $0x518] sm:$0xf]
    %v369 = vld [vmem:[%s1 + $0x51c] sm:$0xf]
    %v370 = vld [vmem:[%s1 + $0x520] sm:$0xf]
    %v371 = vld [vmem:[%s1 + $0x524] sm:$0xf]
    %v372 = vld [vmem:[%s1 + $0x528] sm:$0xf]
    %v373 = vld [vmem:[%s1 + $0x52c] sm:$0xf]
    %v374 = vld [vmem:[%s1 + $0x530] sm:$0xf]
    %v375 = vld [vmem:[%s1 + $0x534] sm:$0xf]
    %v376 = vld [vmem:[%s1 + $0x538] sm:$0xf]
    %v377 = vld [vmem:[%s1 + $0x53c] sm:$0xf]
    %v378 = vld [vmem:[%s1 + $0x540] sm:$0xf]
    %v379 = vld [vmem:[%s1 + $0x544] sm:$0xf]
    %v380 = vld [vmem:[%s1 + $0x548] sm:$0xf]
    %v381 = vld [vmem:[%s1 + $0x54c] sm:$0xf]
    %v382 = vld [vmem:[%s1 + $0x550] sm:$0xf]
    %v383 = vld [vmem:[%s1 + $0x554] sm:$0xf]
    %v384 = vld [vmem:[%s1 + $0x558] sm:$0xf]
    %v385 = vld [vmem:[%s1 + $0x55c] sm:$0xf]
    %v386 = vld [vmem:[%s1 + $0x560] sm:$0xf]
    %v387 = vld [vmem:[%s1 + $0x564] sm:$0xf]
    %v388 = vld [vmem:[%s1 + $0x568] sm:$0xf]
    %v389 = vld [vmem:[%s1 + $0x56c] sm:$0xf]
    %v390 = vld [vmem:[%s1 + $0x570] sm:$0xf]
    %v391 = vld [vmem:[%s1 + $0x574] sm:$0xf]
    %v392 = vld [vmem:[%s1 + $0x578] sm:$0xf]
    %v393 = vld [vmem:[%s1 + $0x57c] sm:$0xf]
    %v394 = vld [vmem:[%s1 + $0x580] sm:$0xf]
    %v395 = vld [vmem:[%s1 + $0x584] sm:$0xf]
    %v396 = vld [vmem:[%s1 + $0x588] sm:$0xf]
    %v397 = vld [vmem:[%s1 + $0x58c] sm:$0xf]
    %v398 = vld [vmem:[%s1 + $0x590] sm:$0xf]
    %v399 = vld [vmem:[%s1 + $0x594] sm:$0xf]
    %v400 = vld [vmem:[%s1 + $0x598] sm:$0xf]
    %v401 = vld [vmem:[%s1 + $0x59c] sm:$0xf]
    %v402 = vld [vmem:[%s1 + $0x5a0] sm:$0xf]
    %v403 = vld [vmem:[%s1 + $0x5a4] sm:$0xf]
    %v404 = vld [vmem:[%s1 + $0x5a8] sm:$0xf]
    %v405 = vld [vmem:[%s1 + $0x5ac] sm:$0xf]
    %v406 = vld [vmem:[%s1 + $0x5b0] sm:$0xf]
    %v407 = vld [vmem:[%s1 + $0x5b4] sm:$0xf]
    %v408 = vld [vmem:[%s1 + $0x5b8] sm:$0xf]
    %v409 = vld [vmem:[%s1 + $0x5bc] sm:$0xf]
    %v410 = vld [vmem:[%s1 + $0x5c0] sm:$0xf]
    %v411 = vld [vmem:[%s1 + $0x5c4] sm:$0xf]
    %v412 = vld [vmem:[%s1 + $0x5c8] sm:$0xf]
    %v413 = vld [vmem:[%s1 + $0x5cc] sm:$0xf]
    %v414 = vld [vmem:[%s1 + $0x5d0] sm:$0xf]
    %v415 = vld [vmem:[%s1 + $0x5d4] sm:$0xf]
    %v416 = vld [vmem:[%s1 + $0x5d8] sm:$0xf]
    %v417 = vld [vmem:[%s1 + $0x5dc] sm:$0xf]
    %v418 = vld [vmem:[%s1 + $0x5e0] sm:$0xf]
    %v419 = vld [vmem:[%s1 + $0x5e4] sm:$0xf]
    %v420 = vld [vmem:[%s1 + $0x5e8] sm:$0xf]
    %v421 = vld [vmem:[%s1 + $0x5ec] sm:$0xf]
    %v422 = vld [vmem:[%s1 + $0x5f0] sm:$0xf]
    %v423 = vld [vmem:[%s1 + $0x5f4] sm:$0xf]
    %v424 = vld [vmem:[%s1 + $0x5f8] sm:$0xf]
    %v425 = vld [vmem:[%s1 + $0x5fc] sm:$0xf]
    %v426 = vld [vmem:[%s1 + $0x600] sm:$0xf]
    %v427 = vld [vmem:[%s1 + $0x604] sm:$0xf]
    %v428 = vld [vmem:[%s1 + $0x608] sm:$0xf]
    %v429 = vld [vmem:[%s1 + $0x60c] sm:$0xf]
    %v430 = vld [vmem:[%s1 + $0x610] sm:$0xf]
    %v431 = vld [vmem:[%s1 + $0x614] sm:$0xf]
    %v432 = vld [vmem:[%s1 + $0x618] sm:$0xf]
    %v433 = vld [vmem:[%s1 + $0x61c] sm:$0xf]
    %v434 = vld [vmem:[%s1 + $0x620] sm:$0xf]
    %v435 = vld [vmem:[%s1 + $0x624] sm:$0xf]
    %v436 = vld [vmem:[%s1 + $0x628] sm:$0xf]
    %v437 = vld [vmem:[%s1 + $0x62c] sm:$0xf]
    %v438 = vld [vmem:[%s1 + $0x630] sm:$0xf]
    %v439 = vld [vmem:[%s1 + $0x634] sm:$0xf]
    %v440 = vld [vmem:[%s1 + $0x638] sm:$0xf]
    %v441 = vld [vmem:[%s1 + $0x63c] sm:$0xf]
    %v442 = vunpack.c.l.bf16 %v42
    %v443 = vunpack.c.l.bf16 %v43
    %v444 = vunpack.c.l.bf16 %v44
    %v445 = vunpack.c.l.bf16 %v45
    %v446 = vunpack.c.l.bf16 %v46
    %v447 = vunpack.c.l.bf16 %v47
    %v448 = vunpack.c.l.bf16 %v48
    %v449 = vunpack.c.l.bf16 %v49
    %v450 = vunpack.c.l.bf16 %v50
    %v451 = vunpack.c.l.bf16 %v51
    %v452 = vunpack.c.l.bf16 %v52
    %v453 = vunpack.c.l.bf16 %v53
    %v454 = vunpack.c.l.bf16 %v54
    %v455 = vunpack.c.l.bf16 %v55
    %v456 = vunpack.c.l.bf16 %v56
    %v457 = vunpack.c.l.bf16 %v57
    %v458 = vunpack.c.l.bf16 %v58
    %v459 = vunpack.c.l.bf16 %v59
    %v460 = vunpack.c.l.bf16 %v60
    %v461 = vunpack.c.l.bf16 %v61
    %v462 = vunpack.c.l.bf16 %v62
    %v463 = vunpack.c.l.bf16 %v63
    %v464 = vunpack.c.l.bf16 %v64
    %v465 = vunpack.c.l.bf16 %v65
    %v466 = vunpack.c.l.bf16 %v66
    %v467 = vunpack.c.l.bf16 %v67
    %v468 = vunpack.c.l.bf16 %v68
    %v469 = vunpack.c.l.bf16 %v69
    %v470 = vunpack.c.l.bf16 %v70
    %v471 = vunpack.c.l.bf16 %v71
    %v472 = vunpack.c.l.bf16 %v72
    %v473 = vunpack.c.l.bf16 %v73
    %v474 = vunpack.c.l.bf16 %v74
    %v475 = vunpack.c.l.bf16 %v75
    %v476 = vunpack.c.l.bf16 %v76
    %v477 = vunpack.c.l.bf16 %v77
    %v478 = vunpack.c.l.bf16 %v78
    %v479 = vunpack.c.l.bf16 %v79
    %v480 = vunpack.c.l.bf16 %v80
    %v481 = vunpack.c.l.bf16 %v81
    %v482 = vunpack.c.l.bf16 %v82
    %v483 = vunpack.c.l.bf16 %v83
    %v484 = vunpack.c.l.bf16 %v84
    %v485 = vunpack.c.l.bf16 %v85
    %v486 = vunpack.c.l.bf16 %v86
    %v487 = vunpack.c.l.bf16 %v87
    %v488 = vunpack.c.l.bf16 %v88
    %v489 = vunpack.c.l.bf16 %v89
    %v490 = vunpack.c.l.bf16 %v90
    %v491 = vunpack.c.l.bf16 %v91
    %v492 = vunpack.c.l.bf16 %v92
    %v493 = vunpack.c.l.bf16 %v93
    %v494 = vunpack.c.l.bf16 %v94
    %v495 = vunpack.c.l.bf16 %v95
    %v496 = vunpack.c.l.bf16 %v96
    %v497 = vunpack.c.l.bf16 %v97
    %v498 = vunpack.c.l.bf16 %v98
    %v499 = vunpack.c.l.bf16 %v99
    %v500 = vunpack.c.l.bf16 %v100
    %v501 = vunpack.c.l.bf16 %v101
    %v502 = vunpack.c.l.bf16 %v102
    %v503 = vunpack.c.l.bf16 %v103
    %v504 = vunpack.c.l.bf16 %v104
    %v505 = vunpack.c.l.bf16 %v105
    %v506 = vunpack.c.l.bf16 %v106
    %v507 = vunpack.c.l.bf16 %v107
    %v508 = vunpack.c.l.bf16 %v108
    %v509 = vunpack.c.l.bf16 %v109
    %v510 = vunpack.c.l.bf16 %v110
    %v511 = vunpack.c.l.bf16 %v111
    %v512 = vunpack.c.l.bf16 %v112
    %v513 = vunpack.c.l.bf16 %v113
    %v514 = vunpack.c.l.bf16 %v114
    %v515 = vunpack.c.l.bf16 %v115
    %v516 = vunpack.c.l.bf16 %v116
    %v517 = vunpack.c.l.bf16 %v117
    %v518 = vunpack.c.l.bf16 %v118
    %v519 = vunpack.c.l.bf16 %v119
    %v520 = vunpack.c.l.bf16 %v120
    %v521 = vunpack.c.l.bf16 %v121
    %v522 = vunpack.c.l.bf16 %v122
    %v523 = vunpack.c.l.bf16 %v123
    %v524 = vunpack.c.l.bf16 %v124
    %v525 = vunpack.c.l.bf16 %v125
    %v526 = vunpack.c.l.bf16 %v126
    %v527 = vunpack.c.l.bf16 %v127
    %v528 = vunpack.c.l.bf16 %v128
    %v529 = vunpack.c.l.bf16 %v129
    %v530 = vunpack.c.l.bf16 %v130
    %v531 = vunpack.c.l.bf16 %v131
    %v532 = vunpack.c.l.bf16 %v132
    %v533 = vunpack.c.l.bf16 %v133
    %v534 = vunpack.c.l.bf16 %v134
    %v535 = vunpack.c.l.bf16 %v135
    %v536 = vunpack.c.l.bf16 %v136
    %v537 = vunpack.c.l.bf16 %v137
    %v538 = vunpack.c.l.bf16 %v138
    %v539 = vunpack.c.l.bf16 %v139
    %v540 = vunpack.c.l.bf16 %v140
    %v541 = vunpack.c.l.bf16 %v141
    %v542 = vunpack.c.l.bf16 %v142
    %v543 = vunpack.c.l.bf16 %v143
    %v544 = vunpack.c.l.bf16 %v144
    %v545 = vunpack.c.l.bf16 %v145
    %v546 = vunpack.c.l.bf16 %v146
    %v547 = vunpack.c.l.bf16 %v147
    %v548 = vunpack.c.l.bf16 %v148
    %v549 = vunpack.c.l.bf16 %v149
    %v550 = vunpack.c.l.bf16 %v150
    %v551 = vunpack.c.l.bf16 %v151
    %v552 = vunpack.c.l.bf16 %v152
    %v553 = vunpack.c.l.bf16 %v153
    %v554 = vunpack.c.l.bf16 %v154
    %v555 = vunpack.c.l.bf16 %v155
    %v556 = vunpack.c.l.bf16 %v156
    %v557 = vunpack.c.l.bf16 %v157
    %v558 = vunpack.c.l.bf16 %v158
    %v559 = vunpack.c.l.bf16 %v159
    %v560 = vunpack.c.l.bf16 %v160
    %v561 = vunpack.c.l.bf16 %v161
    %v562 = vunpack.c.l.bf16 %v162
    %v563 = vunpack.c.l.bf16 %v163
    %v564 = vunpack.c.l.bf16 %v164
    %v565 = vunpack.c.l.bf16 %v165
    %v566 = vunpack.c.l.bf16 %v166
    %v567 = vunpack.c.l.bf16 %v167
    %v568 = vunpack.c.l.bf16 %v168
    %v569 = vunpack.c.l.bf16 %v169
    %v570 = vunpack.c.l.bf16 %v170
    %v571 = vunpack.c.l.bf16 %v171
    %v572 = vunpack.c.l.bf16 %v172
    %v573 = vunpack.c.l.bf16 %v173
    %v574 = vunpack.c.l.bf16 %v174
    %v575 = vunpack.c.l.bf16 %v175
    %v576 = vunpack.c.l.bf16 %v176
    %v577 = vunpack.c.l.bf16 %v177
    %v578 = vunpack.c.l.bf16 %v178
    %v579 = vunpack.c.l.bf16 %v179
    %v580 = vunpack.c.l.bf16 %v180
    %v581 = vunpack.c.l.bf16 %v181
    %v582 = vunpack.c.l.bf16 %v182
    %v583 = vunpack.c.l.bf16 %v183
    %v584 = vunpack.c.l.bf16 %v184
    %v585 = vunpack.c.l.bf16 %v185
    %v586 = vunpack.c.l.bf16 %v186
    %v587 = vunpack.c.l.bf16 %v187
    %v588 = vunpack.c.l.bf16 %v188
    %v589 = vunpack.c.l.bf16 %v189
    %v590 = vunpack.c.l.bf16 %v190
    %v591 = vunpack.c.l.bf16 %v191
    %v592 = vunpack.c.l.bf16 %v192
    %v593 = vunpack.c.l.bf16 %v193
    %v594 = vunpack.c.l.bf16 %v194
    %v595 = vunpack.c.l.bf16 %v195
    %v596 = vunpack.c.l.bf16 %v196
    %v597 = vunpack.c.l.bf16 %v197
    %v598 = vunpack.c.l.bf16 %v198
    %v599 = vunpack.c.l.bf16 %v199
    %v600 = vunpack.c.l.bf16 %v200
    %v601 = vunpack.c.l.bf16 %v201
    %v602 = vunpack.c.l.bf16 %v202
    %v603 = vunpack.c.l.bf16 %v203
    %v604 = vunpack.c.l.bf16 %v204
    %v605 = vunpack.c.l.bf16 %v205
    %v606 = vunpack.c.l.bf16 %v206
    %v607 = vunpack.c.l.bf16 %v207
    %v608 = vunpack.c.l.bf16 %v208
    %v609 = vunpack.c.l.bf16 %v209
    %v610 = vunpack.c.l.bf16 %v210
    %v611 = vunpack.c.l.bf16 %v211
    %v612 = vunpack.c.l.bf16 %v212
    %v613 = vunpack.c.l.bf16 %v213
    %v614 = vunpack.c.l.bf16 %v214
    %v615 = vunpack.c.l.bf16 %v215
    %v616 = vunpack.c.l.bf16 %v216
    %v617 = vunpack.c.l.bf16 %v217
    %v618 = vunpack.c.l.bf16 %v218
    %v619 = vunpack.c.l.bf16 %v219
    %v620 = vunpack.c.l.bf16 %v220
    %v621 = vunpack.c.l.bf16 %v221
    %v622 = vunpack.c.l.bf16 %v222
    %v623 = vunpack.c.l.bf16 %v223
    %v624 = vunpack.c.l.bf16 %v224
    %v625 = vunpack.c.l.bf16 %v225
    %v626 = vunpack.c.l.bf16 %v226
    %v627 = vunpack.c.l.bf16 %v227
    %v628 = vunpack.c.l.bf16 %v228
    %v629 = vunpack.c.l.bf16 %v229
    %v630 = vunpack.c.l.bf16 %v230
    %v631 = vunpack.c.l.bf16 %v231
    %v632 = vunpack.c.l.bf16 %v232
    %v633 = vunpack.c.l.bf16 %v233
    %v634 = vunpack.c.l.bf16 %v234
    %v635 = vunpack.c.l.bf16 %v235
    %v636 = vunpack.c.l.bf16 %v236
    %v637 = vunpack.c.l.bf16 %v237
    %v638 = vunpack.c.l.bf16 %v238
    %v639 = vunpack.c.l.bf16 %v239
    %v640 = vunpack.c.l.bf16 %v240
    %v641 = vunpack.c.l.bf16 %v241
    %v642 = vunpack.c.l.bf16 %v242
    %v643 = vunpack.c.l.bf16 %v243
    %v644 = vunpack.c.l.bf16 %v244
    %v645 = vunpack.c.l.bf16 %v245
    %v646 = vunpack.c.l.bf16 %v246
    %v647 = vunpack.c.l.bf16 %v247
    %v648 = vunpack.c.l.bf16 %v248
    %v649 = vunpack.c.l.bf16 %v249
    %v650 = vunpack.c.l.bf16 %v250
    %v651 = vunpack.c.l.bf16 %v251
    %v652 = vunpack.c.l.bf16 %v252
    %v653 = vunpack.c.l.bf16 %v253
    %v654 = vunpack.c.l.bf16 %v254
    %v655 = vunpack.c.l.bf16 %v255
    %v656 = vunpack.c.l.bf16 %v256
    %v657 = vunpack.c.l.bf16 %v257
    %v658 = vunpack.c.l.bf16 %v258
    %v659 = vunpack.c.l.bf16 %v259
    %v660 = vunpack.c.l.bf16 %v260
    %v661 = vunpack.c.l.bf16 %v261
    %v662 = vunpack.c.l.bf16 %v262
    %v663 = vunpack.c.l.bf16 %v263
    %v664 = vunpack.c.l.bf16 %v264
    %v665 = vunpack.c.l.bf16 %v265
    %v666 = vunpack.c.l.bf16 %v266
    %v667 = vunpack.c.l.bf16 %v267
    %v668 = vunpack.c.l.bf16 %v268
    %v669 = vunpack.c.l.bf16 %v269
    %v670 = vunpack.c.l.bf16 %v270
    %v671 = vunpack.c.l.bf16 %v271
    %v672 = vunpack.c.l.bf16 %v272
    %v673 = vunpack.c.l.bf16 %v273
    %v674 = vunpack.c.l.bf16 %v274
    %v675 = vunpack.c.l.bf16 %v275
    %v676 = vunpack.c.l.bf16 %v276
    %v677 = vunpack.c.l.bf16 %v277
    %v678 = vunpack.c.l.bf16 %v278
    %v679 = vunpack.c.l.bf16 %v279
    %v680 = vunpack.c.l.bf16 %v280
    %v681 = vunpack.c.l.bf16 %v281
    %v682 = vunpack.c.l.bf16 %v282
    %v683 = vunpack.c.l.bf16 %v283
    %v684 = vunpack.c.l.bf16 %v284
    %v685 = vunpack.c.l.bf16 %v285
    %v686 = vunpack.c.l.bf16 %v286
    %v687 = vunpack.c.l.bf16 %v287
    %v688 = vunpack.c.l.bf16 %v288
    %v689 = vunpack.c.l.bf16 %v289
    %v690 = vunpack.c.l.bf16 %v290
    %v691 = vunpack.c.l.bf16 %v291
    %v692 = vunpack.c.l.bf16 %v292
    %v693 = vunpack.c.l.bf16 %v293
    %v694 = vunpack.c.l.bf16 %v294
    %v695 = vunpack.c.l.bf16 %v295
    %v696 = vunpack.c.l.bf16 %v296
    %v697 = vunpack.c.l.bf16 %v297
    %v698 = vunpack.c.l.bf16 %v298
    %v699 = vunpack.c.l.bf16 %v299
    %v700 = vunpack.c.l.bf16 %v300
    %v701 = vunpack.c.l.bf16 %v301
    %v702 = vunpack.c.l.bf16 %v302
    %v703 = vunpack.c.l.bf16 %v303
    %v704 = vunpack.c.l.bf16 %v304
    %v705 = vunpack.c.l.bf16 %v305
    %v706 = vunpack.c.l.bf16 %v306
    %v707 = vunpack.c.l.bf16 %v307
    %v708 = vunpack.c.l.bf16 %v308
    %v709 = vunpack.c.l.bf16 %v309
    %v710 = vunpack.c.l.bf16 %v310
    %v711 = vunpack.c.l.bf16 %v311
    %v712 = vunpack.c.l.bf16 %v312
    %v713 = vunpack.c.l.bf16 %v313
    %v714 = vunpack.c.l.bf16 %v314
    %v715 = vunpack.c.l.bf16 %v315
    %v716 = vunpack.c.l.bf16 %v316
    %v717 = vunpack.c.l.bf16 %v317
    %v718 = vunpack.c.l.bf16 %v318
    %v719 = vunpack.c.l.bf16 %v319
    %v720 = vunpack.c.l.bf16 %v320
    %v721 = vunpack.c.l.bf16 %v321
    %v722 = vunpack.c.l.bf16 %v322
    %v723 = vunpack.c.l.bf16 %v323
    %v724 = vunpack.c.l.bf16 %v324
    %v725 = vunpack.c.l.bf16 %v325
    %v726 = vunpack.c.l.bf16 %v326
    %v727 = vunpack.c.l.bf16 %v327
    %v728 = vunpack.c.l.bf16 %v328
    %v729 = vunpack.c.l.bf16 %v329
    %v730 = vunpack.c.l.bf16 %v330
    %v731 = vunpack.c.l.bf16 %v331
    %v732 = vunpack.c.l.bf16 %v332
    %v733 = vunpack.c.l.bf16 %v333
    %v734 = vunpack.c.l.bf16 %v334
    %v735 = vunpack.c.l.bf16 %v335
    %v736 = vunpack.c.l.bf16 %v336
    %v737 = vunpack.c.l.bf16 %v337
    %v738 = vunpack.c.l.bf16 %v338
    %v739 = vunpack.c.l.bf16 %v339
    %v740 = vunpack.c.l.bf16 %v340
    %v741 = vunpack.c.l.bf16 %v341
    %v742 = vunpack.c.l.bf16 %v342
    %v743 = vunpack.c.l.bf16 %v343
    %v744 = vunpack.c.l.bf16 %v344
    %v745 = vunpack.c.l.bf16 %v345
    %v746 = vunpack.c.l.bf16 %v346
    %v747 = vunpack.c.l.bf16 %v347
    %v748 = vunpack.c.l.bf16 %v348
    %v749 = vunpack.c.l.bf16 %v349
    %v750 = vunpack.c.l.bf16 %v350
    %v751 = vunpack.c.l.bf16 %v351
    %v752 = vunpack.c.l.bf16 %v352
    %v753 = vunpack.c.l.bf16 %v353
    %v754 = vunpack.c.l.bf16 %v354
    %v755 = vunpack.c.l.bf16 %v355
    %v756 = vunpack.c.l.bf16 %v356
    %v757 = vunpack.c.l.bf16 %v357
    %v758 = vunpack.c.l.bf16 %v358
    %v759 = vunpack.c.l.bf16 %v359
    %v760 = vunpack.c.l.bf16 %v360
    %v761 = vunpack.c.l.bf16 %v361
    %v762 = vunpack.c.l.bf16 %v362
    %v763 = vunpack.c.l.bf16 %v363
    %v764 = vunpack.c.l.bf16 %v364
    %v765 = vunpack.c.l.bf16 %v365
    %v766 = vunpack.c.l.bf16 %v366
    %v767 = vunpack.c.l.bf16 %v367
    %v768 = vunpack.c.l.bf16 %v368
    %v769 = vunpack.c.l.bf16 %v369
    %v770 = vunpack.c.l.bf16 %v370
    %v771 = vunpack.c.l.bf16 %v371
    %v772 = vunpack.c.l.bf16 %v372
    %v773 = vunpack.c.l.bf16 %v373
    %v774 = vunpack.c.l.bf16 %v374
    %v775 = vunpack.c.l.bf16 %v375
    %v776 = vunpack.c.l.bf16 %v376
    %v777 = vunpack.c.l.bf16 %v377
    %v778 = vunpack.c.l.bf16 %v378
    %v779 = vunpack.c.l.bf16 %v379
    %v780 = vunpack.c.l.bf16 %v380
    %v781 = vunpack.c.l.bf16 %v381
    %v782 = vunpack.c.l.bf16 %v382
    %v783 = vunpack.c.l.bf16 %v383
    %v784 = vunpack.c.l.bf16 %v384
    %v785 = vunpack.c.l.bf16 %v385
    %v786 = vunpack.c.l.bf16 %v386
    %v787 = vunpack.c.l.bf16 %v387
    %v788 = vunpack.c.l.bf16 %v388
    %v789 = vunpack.c.l.bf16 %v389
    %v790 = vunpack.c.l.bf16 %v390
    %v791 = vunpack.c.l.bf16 %v391
    %v792 = vunpack.c.l.bf16 %v392
    %v793 = vunpack.c.l.bf16 %v393
    %v794 = vunpack.c.l.bf16 %v394
    %v795 = vunpack.c.l.bf16 %v395
    %v796 = vunpack.c.l.bf16 %v396
    %v797 = vunpack.c.l.bf16 %v397
    %v798 = vunpack.c.l.bf16 %v398
    %v799 = vunpack.c.l.bf16 %v399
    %v800 = vunpack.c.l.bf16 %v400
    %v801 = vunpack.c.l.bf16 %v401
    %v802 = vunpack.c.l.bf16 %v402
    %v803 = vunpack.c.l.bf16 %v403
    %v804 = vunpack.c.l.bf16 %v404
    %v805 = vunpack.c.l.bf16 %v405
    %v806 = vunpack.c.l.bf16 %v406
    %v807 = vunpack.c.l.bf16 %v407
    %v808 = vunpack.c.l.bf16 %v408
    %v809 = vunpack.c.l.bf16 %v409
    %v810 = vunpack.c.l.bf16 %v410
    %v811 = vunpack.c.l.bf16 %v411
    %v812 = vunpack.c.l.bf16 %v412
    %v813 = vunpack.c.l.bf16 %v413
    %v814 = vunpack.c.l.bf16 %v414
    %v815 = vunpack.c.l.bf16 %v415
    %v816 = vunpack.c.l.bf16 %v416
    %v817 = vunpack.c.l.bf16 %v417
    %v818 = vunpack.c.l.bf16 %v418
    %v819 = vunpack.c.l.bf16 %v419
    %v820 = vunpack.c.l.bf16 %v420
    %v821 = vunpack.c.l.bf16 %v421
    %v822 = vunpack.c.l.bf16 %v422
    %v823 = vunpack.c.l.bf16 %v423
    %v824 = vunpack.c.l.bf16 %v424
    %v825 = vunpack.c.l.bf16 %v425
    %v826 = vunpack.c.l.bf16 %v426
    %v827 = vunpack.c.l.bf16 %v427
    %v828 = vunpack.c.l.bf16 %v428
    %v829 = vunpack.c.l.bf16 %v429
    %v830 = vunpack.c.l.bf16 %v430
    %v831 = vunpack.c.l.bf16 %v431
    %v832 = vunpack.c.l.bf16 %v432
    %v833 = vunpack.c.l.bf16 %v433
    %v834 = vunpack.c.l.bf16 %v434
    %v835 = vunpack.c.l.bf16 %v435
    %v836 = vunpack.c.l.bf16 %v436
    %v837 = vunpack.c.l.bf16 %v437
    %v838 = vunpack.c.l.bf16 %v438
    %v839 = vunpack.c.l.bf16 %v439
    %v840 = vunpack.c.l.bf16 %v440
    %v841 = vunpack.c.l.bf16 %v441
    %v854 = vcombine.high %v29, %v29
    %v855 = vcombine.high %v30, %v30
    %v856 = vcombine.high %v31, %v31
    %v857 = vcombine.high %v32, %v32
    %v858 = vcombine.high %v33, %v33
    %v859 = vcombine.high %v34, %v34
    %v860 = vcombine.high %v35, %v35
    %v861 = vcombine.high %v36, %v36
    %v862 = vcombine.high %v37, %v37
    %v863 = vcombine.high %v38, %v38
    %v864 = vcombine.high %v39, %v39
    %v865 = vcombine.high %v40, %v40
    %878 = vmatprep.subr.mxu0 0.0
    %879 = vmatpush1.msra.mxu0 %v442
    %880 = vmatprep.subr.mxu0 0.0
    %881 = vmatpush1.msra.mxu0 %v443
    %882 = vmatprep.subr.mxu0 0.0
    %883 = vmatpush1.msra.mxu0 %v444
    %884 = vmatprep.subr.mxu0 0.0
    %885 = vmatpush1.msra.mxu0 %v445
    %886 = vmatprep.subr.mxu0 0.0
    %887 = vmatpush1.msra.mxu0 %v446
    %888 = vmatprep.subr.mxu0 0.0
    %889 = vmatpush1.msra.mxu0 %v447
    %890 = vmatprep.subr.mxu0 0.0
    %891 = vmatpush1.msra.mxu0 %v448
    %892 = vmatprep.subr.mxu0 0.0
    %893 = vmatpush1.msra.mxu0 %v449
    %894 = vmatprep.subr.mxu0 0.0
    %895 = vmatpush1.msra.mxu0 %v450
    %896 = vmatprep.subr.mxu0 0.0
    %897 = vmatpush1.msra.mxu0 %v451
    %898 = vmatprep.subr.mxu0 0.0
    %899 = vmatpush1.msra.mxu0 %v452
    %900 = vmatprep.subr.mxu0 0.0
    %901 = vmatpush1.msra.mxu0 %v453
    %902 = vmatprep.subr.mxu0 0.0
    %903 = vmatpush1.msra.mxu0 %v454
    %904 = vmatprep.subr.mxu0 0.0
    %905 = vmatpush1.msra.mxu0 %v455
    %906 = vmatprep.subr.mxu0 0.0
    %907 = vmatpush1.msra.mxu0 %v456
    %908 = vmatprep.subr.mxu0 0.0
    %909 = vmatpush1.msra.mxu0 %v457
    %910 = vmatprep.subr.mxu0 0.0
    %911 = vmatpush1.msra.mxu0 %v458
    %912 = vmatprep.subr.mxu0 0.0
    %913 = vmatpush1.msra.mxu0 %v459
    %914 = vmatprep.subr.mxu0 0.0
    %915 = vmatpush1.msra.mxu0 %v460
    %916 = vmatprep.subr.mxu0 0.0
    %917 = vmatpush1.msra.mxu0 %v461
    %918 = vmatprep.subr.mxu0 0.0
    %919 = vmatpush1.msra.mxu0 %v462
    %920 = vmatprep.subr.mxu0 0.0
    %921 = vmatpush1.msra.mxu0 %v463
    %922 = vmatprep.subr.mxu0 0.0
    %923 = vmatpush1.msra.mxu0 %v464
    %924 = vmatprep.subr.mxu0 0.0
    %925 = vmatpush1.msra.mxu0 %v465
    %926 = vmatprep.subr.mxu0 0.0
    %927 = vmatpush1.msra.mxu0 %v466
    %928 = vmatprep.subr.mxu0 0.0
    %929 = vmatpush1.msra.mxu0 %v467
    %930 = vmatprep.subr.mxu0 0.0
    %931 = vmatpush1.msra.mxu0 %v468
    %932 = vmatprep.subr.mxu0 0.0
    %933 = vmatpush1.msra.mxu0 %v469
    %934 = vmatprep.subr.mxu0 0.0
    %935 = vmatpush1.msra.mxu0 %v470
    %936 = vmatprep.subr.mxu0 0.0
    %937 = vmatpush1.msra.mxu0 %v471
    %938 = vmatprep.subr.mxu0 0.0
    %939 = vmatpush1.msra.mxu0 %v472
    %940 = vmatprep.subr.mxu0 0.0
    %941 = vmatpush1.msra.mxu0 %v473
    %942 = vmatprep.mubr.f32.mxu0 %v854
    %943 = vmatmul.mubr.f32.gmra.mrb[0].mxu0 %v29
    %v944 = vpop.f32.mrb[0].mxu0
    %v945 = vadd.f32 0.0, %v944
    %v946 = vpop.f32.mrb[0].mxu0
    %947 = vdwg.mxu0
    %948 = vmatprep.subr.mxu0 0.0
    %949 = vmatpush1.msra.mxu0 %v474
    %950 = vmatprep.subr.mxu0 0.0
    %951 = vmatpush1.msra.mxu0 %v475
    %952 = vmatprep.subr.mxu0 0.0
    %953 = vmatpush1.msra.mxu0 %v476
    %954 = vmatprep.subr.mxu0 0.0
    %955 = vmatpush1.msra.mxu0 %v477
    %956 = vmatprep.subr.mxu0 0.0
    %957 = vmatpush1.msra.mxu0 %v478
    %958 = vmatprep.subr.mxu0 0.0
    %959 = vmatpush1.msra.mxu0 %v479
    %960 = vmatprep.subr.mxu0 0.0
    %961 = vmatpush1.msra.mxu0 %v480
    %962 = vmatprep.subr.mxu0 0.0
    %963 = vmatpush1.msra.mxu0 %v481
    %964 = vmatprep.subr.mxu0 0.0
    %965 = vmatpush1.msra.mxu0 %v482
    %966 = vmatprep.subr.mxu0 0.0
    %967 = vmatpush1.msra.mxu0 %v483
    %968 = vmatprep.subr.mxu0 0.0
    %969 = vmatpush1.msra.mxu0 %v484
    %970 = vmatprep.subr.mxu0 0.0
    %971 = vmatpush1.msra.mxu0 %v485
    %972 = vmatprep.subr.mxu0 0.0
    %973 = vmatpush1.msra.mxu0 %v486
    %974 = vmatprep.subr.mxu0 0.0
    %975 = vmatpush1.msra.mxu0 %v487
    %976 = vmatprep.subr.mxu0 0.0
    %977 = vmatpush1.msra.mxu0 %v488
    %978 = vmatprep.subr.mxu0 0.0
    %979 = vmatpush1.msra.mxu0 %v489
    %980 = vmatprep.subr.mxu0 0.0
    %981 = vmatpush1.msra.mxu0 %v490
    %982 = vmatprep.subr.mxu0 0.0
    %983 = vmatpush1.msra.mxu0 %v491
    %984 = vmatprep.subr.mxu0 0.0
    %985 = vmatpush1.msra.mxu0 %v492
    %986 = vmatprep.subr.mxu0 0.0
    %987 = vmatpush1.msra.mxu0 %v493
    %988 = vmatprep.subr.mxu0 0.0
    %989 = vmatpush1.msra.mxu0 %v494
    %990 = vmatprep.subr.mxu0 0.0
    %991 = vmatpush1.msra.mxu0 %v495
    %992 = vmatprep.subr.mxu0 0.0
    %993 = vmatpush1.msra.mxu0 %v496
    %994 = vmatprep.subr.mxu0 0.0
    %995 = vmatpush1.msra.mxu0 %v497
    %996 = vmatprep.subr.mxu0 0.0
    %997 = vmatpush1.msra.mxu0 %v498
    %998 = vmatprep.subr.mxu0 0.0
    %999 = vmatpush1.msra.mxu0 %v499
    %1000 = vmatprep.subr.mxu0 0.0
    %1001 = vmatpush1.msra.mxu0 %v500
    %1002 = vmatprep.subr.mxu0 0.0
    %1003 = vmatpush1.msra.mxu0 %v501
    %1004 = vmatprep.subr.mxu0 0.0
    %1005 = vmatpush1.msra.mxu0 %v502
    %1006 = vmatprep.subr.mxu0 0.0
    %1007 = vmatpush1.msra.mxu0 %v503
    %1008 = vmatprep.subr.mxu0 0.0
    %1009 = vmatpush1.msra.mxu0 %v504
    %1010 = vmatprep.subr.mxu0 0.0
    %1011 = vmatpush1.msra.mxu0 %v505
    %1012 = vmatprep.mubr.f32.mxu0 %v855
    %1013 = vmatmul.mubr.f32.gmra.mrb[0].mxu0 %v30
    %v1014 = vpop.f32.mrb[0].mxu0
    %v1015 = vadd.f32 %v945, %v1014
    %v1016 = vpop.f32.mrb[0].mxu0
    %1017 = vdwg.mxu0
    %1018 = vmatprep.subr.mxu0 0.0
    %1019 = vmatpush1.msra.mxu0 %v506
    %1020 = vmatprep.subr.mxu0 0.0
    %1021 = vmatpush1.msra.mxu0 %v507
    %1022 = vmatprep.subr.mxu0 0.0
    %1023 = vmatpush1.msra.mxu0 %v508
    %1024 = vmatprep.subr.mxu0 0.0
    %1025 = vmatpush1.msra.mxu0 %v509
    %1026 = vmatprep.subr.mxu0 0.0
    %1027 = vmatpush1.msra.mxu0 %v510
    %1028 = vmatprep.subr.mxu0 0.0
    %1029 = vmatpush1.msra.mxu0 %v511
    %1030 = vmatprep.subr.mxu0 0.0
    %1031 = vmatpush1.msra.mxu0 %v512
    %1032 = vmatprep.subr.mxu0 0.0
    %1033 = vmatpush1.msra.mxu0 %v513
    %1034 = vmatprep.subr.mxu0 0.0
    %1035 = vmatpush1.msra.mxu0 %v514
    %1036 = vmatprep.subr.mxu0 0.0
    %1037 = vmatpush1.msra.mxu0 %v515
    %1038 = vmatprep.subr.mxu0 0.0
    %1039 = vmatpush1.msra.mxu0 %v516
    %1040 = vmatprep.subr.mxu0 0.0
    %1041 = vmatpush1.msra.mxu0 %v517
    %1042 = vmatprep.subr.mxu0 0.0
    %1043 = vmatpush1.msra.mxu0 %v518
    %1044 = vmatprep.subr.mxu0 0.0
    %1045 = vmatpush1.msra.mxu0 %v519
    %1046 = vmatprep.subr.mxu0 0.0
    %1047 = vmatpush1.msra.mxu0 %v520
    %1048 = vmatprep.subr.mxu0 0.0
    %1049 = vmatpush1.msra.mxu0 %v521
    %1050 = vmatprep.subr.mxu0 0.0
    %1051 = vmatpush1.msra.mxu0 %v522
    %1052 = vmatprep.subr.mxu0 0.0
    %1053 = vmatpush1.msra.mxu0 %v523
    %1054 = vmatprep.subr.mxu0 0.0
    %1055 = vmatpush1.msra.mxu0 %v524
    %1056 = vmatprep.subr.mxu0 0.0
    %1057 = vmatpush1.msra.mxu0 %v525
    %1058 = vmatprep.subr.mxu0 0.0
    %1059 = vmatpush1.msra.mxu0 %v526
    %1060 = vmatprep.subr.mxu0 0.0
    %1061 = vmatpush1.msra.mxu0 %v527
    %1062 = vmatprep.subr.mxu0 0.0
    %1063 = vmatpush1.msra.mxu0 %v528
    %1064 = vmatprep.subr.mxu0 0.0
    %1065 = vmatpush1.msra.mxu0 %v529
    %1066 = vmatprep.subr.mxu0 0.0
    %1067 = vmatpush1.msra.mxu0 %v530
    %1068 = vmatprep.subr.mxu0 0.0
    %1069 = vmatpush1.msra.mxu0 %v531
    %1070 = vmatprep.subr.mxu0 0.0
    %1071 = vmatpush1.msra.mxu0 %v532
    %1072 = vmatprep.subr.mxu0 0.0
    %1073 = vmatpush1.msra.mxu0 %v533
    %1074 = vmatprep.subr.mxu0 0.0
    %1075 = vmatpush1.msra.mxu0 %v534
    %1076 = vmatprep.subr.mxu0 0.0
    %1077 = vmatpush1.msra.mxu0 %v535
    %1078 = vmatprep.subr.mxu0 0.0
    %1079 = vmatpush1.msra.mxu0 %v536
    %1080 = vmatprep.subr.mxu0 0.0
    %1081 = vmatpush1.msra.mxu0 %v537
    %1082 = vmatprep.mubr.f32.mxu0 %v856
    %1083 = vmatmul.mubr.f32.gmra.mrb[0].mxu0 %v31
    %v1084 = vpop.f32.mrb[0].mxu0
    %v1085 = vadd.f32 %v1015, %v1084
    %v1086 = vpop.f32.mrb[0].mxu0
    %1087 = vdwg.mxu0
    %1088 = vmatprep.subr.mxu0 0.0
    %1089 = vmatpush1.msra.mxu0 %v538
    %1090 = vmatprep.subr.mxu0 0.0
    %1091 = vmatpush1.msra.mxu0 %v539
    %1092 = vmatprep.subr.mxu0 0.0
    %1093 = vmatpush1.msra.mxu0 %v540
    %1094 = vmatprep.subr.mxu0 0.0
    %1095 = vmatpush1.msra.mxu0 %v541
    %1096 = vmatprep.subr.mxu0 0.0
    %1097 = vmatpush1.msra.mxu0 %v542
    %1098 = vmatprep.subr.mxu0 0.0
    %1099 = vmatpush1.msra.mxu0 %v543
    %1100 = vmatprep.subr.mxu0 0.0
    %1101 = vmatpush1.msra.mxu0 %v544
    %1102 = vmatprep.subr.mxu0 0.0
    %1103 = vmatpush1.msra.mxu0 %v545
    %1104 = vmatprep.subr.mxu0 0.0
    %1105 = vmatpush1.msra.mxu0 %v546
    %1106 = vmatprep.subr.mxu0 0.0
    %1107 = vmatpush1.msra.mxu0 %v547
    %1108 = vmatprep.subr.mxu0 0.0
    %1109 = vmatpush1.msra.mxu0 %v548
    %1110 = vmatprep.subr.mxu0 0.0
    %1111 = vmatpush1.msra.mxu0 %v549
    %1112 = vmatprep.subr.mxu0 0.0
    %1113 = vmatpush1.msra.mxu0 %v550
    %1114 = vmatprep.subr.mxu0 0.0
    %1115 = vmatpush1.msra.mxu0 %v551
    %1116 = vmatprep.subr.mxu0 0.0
    %1117 = vmatpush1.msra.mxu0 %v552
    %1118 = vmatprep.subr.mxu0 0.0
    %1119 = vmatpush1.msra.mxu0 %v553
    %1120 = vmatprep.subr.mxu0 0.0
    %1121 = vmatpush1.msra.mxu0 %v554
    %1122 = vmatprep.subr.mxu0 0.0
    %1123 = vmatpush1.msra.mxu0 %v555
    %1124 = vmatprep.subr.mxu0 0.0
    %1125 = vmatpush1.msra.mxu0 %v556
    %1126 = vmatprep.subr.mxu0 0.0
    %1127 = vmatpush1.msra.mxu0 %v557
    %1128 = vmatprep.subr.mxu0 0.0
    %1129 = vmatpush1.msra.mxu0 %v558
    %1130 = vmatprep.subr.mxu0 0.0
    %1131 = vmatpush1.msra.mxu0 %v559
    %1132 = vmatprep.subr.mxu0 0.0
    %1133 = vmatpush1.msra.mxu0 %v560
    %1134 = vmatprep.subr.mxu0 0.0
    %1135 = vmatpush1.msra.mxu0 %v561
    %1136 = vmatprep.subr.mxu0 0.0
    %1137 = vmatpush1.msra.mxu0 %v562
    %1138 = vmatprep.subr.mxu0 0.0
    %1139 = vmatpush1.msra.mxu0 %v563
    %1140 = vmatprep.subr.mxu0 0.0
    %1141 = vmatpush1.msra.mxu0 %v564
    %1142 = vmatprep.subr.mxu0 0.0
    %1143 = vmatpush1.msra.mxu0 %v565
    %1144 = vmatprep.subr.mxu0 0.0
    %1145 = vmatpush1.msra.mxu0 %v566
    %1146 = vmatprep.subr.mxu0 0.0
    %1147 = vmatpush1.msra.mxu0 %v567
    %1148 = vmatprep.subr.mxu0 0.0
    %1149 = vmatpush1.msra.mxu0 %v568
    %1150 = vmatprep.subr.mxu0 0.0
    %1151 = vmatpush1.msra.mxu0 %v569
    %1152 = vmatprep.mubr.f32.mxu0 %v857
    %1153 = vmatmul.mubr.f32.gmra.mrb[0].mxu0 %v32
    %v1154 = vpop.f32.mrb[0].mxu0
    %v1155 = vadd.f32 %v1085, %v1154
    %v1156 = vpop.f32.mrb[0].mxu0
    %1157 = vdwg.mxu0
    %1158 = vmatprep.subr.mxu0 0.0
    %1159 = vmatpush1.msra.mxu0 %v570
    %1160 = vmatprep.subr.mxu0 0.0
    %1161 = vmatpush1.msra.mxu0 %v571
    %1162 = vmatprep.subr.mxu0 0.0
    %1163 = vmatpush1.msra.mxu0 %v572
    %1164 = vmatprep.subr.mxu0 0.0
    %1165 = vmatpush1.msra.mxu0 %v573
    %1166 = vmatprep.subr.mxu0 0.0
    %1167 = vmatpush1.msra.mxu0 %v574
    %1168 = vmatprep.subr.mxu0 0.0
    %1169 = vmatpush1.msra.mxu0 %v575
    %1170 = vmatprep.subr.mxu0 0.0
    %1171 = vmatpush1.msra.mxu0 %v576
    %1172 = vmatprep.subr.mxu0 0.0
    %1173 = vmatpush1.msra.mxu0 %v577
    %1174 = vmatprep.subr.mxu0 0.0
    %1175 = vmatpush1.msra.mxu0 %v578
    %1176 = vmatprep.subr.mxu0 0.0
    %1177 = vmatpush1.msra.mxu0 %v579
    %1178 = vmatprep.subr.mxu0 0.0
    %1179 = vmatpush1.msra.mxu0 %v580
    %1180 = vmatprep.subr.mxu0 0.0
    %1181 = vmatpush1.msra.mxu0 %v581
    %1182 = vmatprep.subr.mxu0 0.0
    %1183 = vmatpush1.msra.mxu0 %v582
    %1184 = vmatprep.subr.mxu0 0.0
    %1185 = vmatpush1.msra.mxu0 %v583
    %1186 = vmatprep.subr.mxu0 0.0
    %1187 = vmatpush1.msra.mxu0 %v584
    %1188 = vmatprep.subr.mxu0 0.0
    %1189 = vmatpush1.msra.mxu0 %v585
    %1190 = vmatprep.subr.mxu0 0.0
    %1191 = vmatpush1.msra.mxu0 %v586
    %1192 = vmatprep.subr.mxu0 0.0
    %1193 = vmatpush1.msra.mxu0 %v587
    %1194 = vmatprep.subr.mxu0 0.0
    %1195 = vmatpush1.msra.mxu0 %v588
    %1196 = vmatprep.subr.mxu0 0.0
    %1197 = vmatpush1.msra.mxu0 %v589
    %1198 = vmatprep.subr.mxu0 0.0
    %1199 = vmatpush1.msra.mxu0 %v590
    %1200 = vmatprep.subr.mxu0 0.0
    %1201 = vmatpush1.msra.mxu0 %v591
    %1202 = vmatprep.subr.mxu0 0.0
    %1203 = vmatpush1.msra.mxu0 %v592
    %1204 = vmatprep.subr.mxu0 0.0
    %1205 = vmatpush1.msra.mxu0 %v593
    %1206 = vmatprep.subr.mxu0 0.0
    %1207 = vmatpush1.msra.mxu0 %v594
    %1208 = vmatprep.subr.mxu0 0.0
    %1209 = vmatpush1.msra.mxu0 %v595
    %1210 = vmatprep.subr.mxu0 0.0
    %1211 = vmatpush1.msra.mxu0 %v596
    %1212 = vmatprep.subr.mxu0 0.0
    %1213 = vmatpush1.msra.mxu0 %v597
    %1214 = vmatprep.subr.mxu0 0.0
    %1215 = vmatpush1.msra.mxu0 %v598
    %1216 = vmatprep.subr.mxu0 0.0
    %1217 = vmatpush1.msra.mxu0 %v599
    %1218 = vmatprep.subr.mxu0 0.0
    %1219 = vmatpush1.msra.mxu0 %v600
    %1220 = vmatprep.subr.mxu0 0.0
    %1221 = vmatpush1.msra.mxu0 %v601
    %1222 = vmatprep.mubr.f32.mxu0 %v858
    %1223 = vmatmul.mubr.f32.gmra.mrb[0].mxu0 %v33
    %v1224 = vpop.f32.mrb[0].mxu0
    %v1225 = vadd.f32 %v1155, %v1224
    %v1226 = vpop.f32.mrb[0].mxu0
    %1227 = vdwg.mxu0
    %1228 = vmatprep.subr.mxu0 0.0
    %1229 = vmatpush1.msra.mxu0 %v602
    %1230 = vmatprep.subr.mxu0 0.0
    %1231 = vmatpush1.msra.mxu0 %v603
    %1232 = vmatprep.subr.mxu0 0.0
    %1233 = vmatpush1.msra.mxu0 %v604
    %1234 = vmatprep.subr.mxu0 0.0
    %1235 = vmatpush1.msra.mxu0 %v605
    %1236 = vmatprep.subr.mxu0 0.0
    %1237 = vmatpush1.msra.mxu0 %v606
    %1238 = vmatprep.subr.mxu0 0.0
    %1239 = vmatpush1.msra.mxu0 %v607
    %1240 = vmatprep.subr.mxu0 0.0
    %1241 = vmatpush1.msra.mxu0 %v608
    %1242 = vmatprep.subr.mxu0 0.0
    %1243 = vmatpush1.msra.mxu0 %v609
    %1244 = vmatprep.subr.mxu0 0.0
    %1245 = vmatpush1.msra.mxu0 %v610
    %1246 = vmatprep.subr.mxu0 0.0
    %1247 = vmatpush1.msra.mxu0 %v611
    %1248 = vmatprep.subr.mxu0 0.0
    %1249 = vmatpush1.msra.mxu0 %v612
    %1250 = vmatprep.subr.mxu0 0.0
    %1251 = vmatpush1.msra.mxu0 %v613
    %1252 = vmatprep.subr.mxu0 0.0
    %1253 = vmatpush1.msra.mxu0 %v614
    %1254 = vmatprep.subr.mxu0 0.0
    %1255 = vmatpush1.msra.mxu0 %v615
    %1256 = vmatprep.subr.mxu0 0.0
    %1257 = vmatpush1.msra.mxu0 %v616
    %1258 = vmatprep.subr.mxu0 0.0
    %1259 = vmatpush1.msra.mxu0 %v617
    %1260 = vmatprep.subr.mxu0 0.0
    %1261 = vmatpush1.msra.mxu0 %v618
    %1262 = vmatprep.subr.mxu0 0.0
    %1263 = vmatpush1.msra.mxu0 %v619
    %1264 = vmatprep.subr.mxu0 0.0
    %1265 = vmatpush1.msra.mxu0 %v620
    %1266 = vmatprep.subr.mxu0 0.0
    %1267 = vmatpush1.msra.mxu0 %v621
    %1268 = vmatprep.subr.mxu0 0.0
    %1269 = vmatpush1.msra.mxu0 %v622
    %1270 = vmatprep.subr.mxu0 0.0
    %1271 = vmatpush1.msra.mxu0 %v623
    %1272 = vmatprep.subr.mxu0 0.0
    %1273 = vmatpush1.msra.mxu0 %v624
    %1274 = vmatprep.subr.mxu0 0.0
    %1275 = vmatpush1.msra.mxu0 %v625
    %1276 = vmatprep.subr.mxu0 0.0
    %1277 = vmatpush1.msra.mxu0 %v626
    %1278 = vmatprep.subr.mxu0 0.0
    %1279 = vmatpush1.msra.mxu0 %v627
    %1280 = vmatprep.subr.mxu0 0.0
    %1281 = vmatpush1.msra.mxu0 %v628
    %1282 = vmatprep.subr.mxu0 0.0
    %1283 = vmatpush1.msra.mxu0 %v629
    %1284 = vmatprep.subr.mxu0 0.0
    %1285 = vmatpush1.msra.mxu0 %v630
    %1286 = vmatprep.subr.mxu0 0.0
    %1287 = vmatpush1.msra.mxu0 %v631
    %1288 = vmatprep.subr.mxu0 0.0
    %1289 = vmatpush1.msra.mxu0 %v632
    %1290 = vmatprep.subr.mxu0 0.0
    %1291 = vmatpush1.msra.mxu0 %v633
    %1292 = vmatprep.mubr.f32.mxu0 %v859
    %1293 = vmatmul.mubr.f32.gmra.mrb[0].mxu0 %v34
    %v1294 = vpop.f32.mrb[0].mxu0
    %v1295 = vadd.f32 %v1225, %v1294
    %v1296 = vpop.f32.mrb[0].mxu0
    %1297 = vdwg.mxu0
    %1298 = vmatprep.subr.mxu0 0.0
    %1299 = vmatpush1.msra.mxu0 %v634
    %1300 = vmatprep.subr.mxu0 0.0
    %1301 = vmatpush1.msra.mxu0 %v635
    %1302 = vmatprep.subr.mxu0 0.0
    %1303 = vmatpush1.msra.mxu0 %v636
    %1304 = vmatprep.subr.mxu0 0.0
    %1305 = vmatpush1.msra.mxu0 %v637
    %1306 = vmatprep.subr.mxu0 0.0
    %1307 = vmatpush1.msra.mxu0 %v638
    %1308 = vmatprep.subr.mxu0 0.0
    %1309 = vmatpush1.msra.mxu0 %v639
    %1310 = vmatprep.subr.mxu0 0.0
    %1311 = vmatpush1.msra.mxu0 %v640
    %1312 = vmatprep.subr.mxu0 0.0
    %1313 = vmatpush1.msra.mxu0 %v641
    %1314 = vmatprep.subr.mxu0 0.0
    %1315 = vmatpush1.msra.mxu0 %v642
    %1316 = vmatprep.subr.mxu0 0.0
    %1317 = vmatpush1.msra.mxu0 %v643
    %1318 = vmatprep.subr.mxu0 0.0
    %1319 = vmatpush1.msra.mxu0 %v644
    %1320 = vmatprep.subr.mxu0 0.0
    %1321 = vmatpush1.msra.mxu0 %v645
    %1322 = vmatprep.subr.mxu0 0.0
    %1323 = vmatpush1.msra.mxu0 %v646
    %1324 = vmatprep.subr.mxu0 0.0
    %1325 = vmatpush1.msra.mxu0 %v647
    %1326 = vmatprep.subr.mxu0 0.0
    %1327 = vmatpush1.msra.mxu0 %v648
    %1328 = vmatprep.subr.mxu0 0.0
    %1329 = vmatpush1.msra.mxu0 %v649
    %1330 = vmatprep.subr.mxu0 0.0
    %1331 = vmatpush1.msra.mxu0 %v650
    %1332 = vmatprep.subr.mxu0 0.0
    %1333 = vmatpush1.msra.mxu0 %v651
    %1334 = vmatprep.subr.mxu0 0.0
    %1335 = vmatpush1.msra.mxu0 %v652
    %1336 = vmatprep.subr.mxu0 0.0
    %1337 = vmatpush1.msra.mxu0 %v653
    %1338 = vmatprep.subr.mxu0 0.0
    %1339 = vmatpush1.msra.mxu0 %v654
    %1340 = vmatprep.subr.mxu0 0.0
    %1341 = vmatpush1.msra.mxu0 %v655
    %1342 = vmatprep.subr.mxu0 0.0
    %1343 = vmatpush1.msra.mxu0 %v656
    %1344 = vmatprep.subr.mxu0 0.0
    %1345 = vmatpush1.msra.mxu0 %v657
    %1346 = vmatprep.subr.mxu0 0.0
    %1347 = vmatpush1.msra.mxu0 %v658
    %1348 = vmatprep.subr.mxu0 0.0
    %1349 = vmatpush1.msra.mxu0 %v659
    %1350 = vmatprep.subr.mxu0 0.0
    %1351 = vmatpush1.msra.mxu0 %v660
    %1352 = vmatprep.subr.mxu0 0.0
    %1353 = vmatpush1.msra.mxu0 %v661
    %1354 = vmatprep.subr.mxu0 0.0
    %1355 = vmatpush1.msra.mxu0 %v662
    %1356 = vmatprep.subr.mxu0 0.0
    %1357 = vmatpush1.msra.mxu0 %v663
    %1358 = vmatprep.subr.mxu0 0.0
    %1359 = vmatpush1.msra.mxu0 %v664
    %1360 = vmatprep.subr.mxu0 0.0
    %1361 = vmatpush1.msra.mxu0 %v665
    %1362 = vmatprep.mubr.f32.mxu0 %v860
    %1363 = vmatmul.mubr.f32.gmra.mrb[0].mxu0 %v35
    %v1364 = vpop.f32.mrb[0].mxu0
    %v1365 = vadd.f32 %v1295, %v1364
    %v1366 = vpop.f32.mrb[0].mxu0
    %1367 = vdwg.mxu0
    %1368 = vmatprep.subr.mxu0 0.0
    %1369 = vmatpush1.msra.mxu0 %v666
    %1370 = vmatprep.subr.mxu0 0.0
    %1371 = vmatpush1.msra.mxu0 %v667
    %1372 = vmatprep.subr.mxu0 0.0
    %1373 = vmatpush1.msra.mxu0 %v668
    %1374 = vmatprep.subr.mxu0 0.0
    %1375 = vmatpush1.msra.mxu0 %v669
    %1376 = vmatprep.subr.mxu0 0.0
    %1377 = vmatpush1.msra.mxu0 %v670
    %1378 = vmatprep.subr.mxu0 0.0
    %1379 = vmatpush1.msra.mxu0 %v671
    %1380 = vmatprep.subr.mxu0 0.0
    %1381 = vmatpush1.msra.mxu0 %v672
    %1382 = vmatprep.subr.mxu0 0.0
    %1383 = vmatpush1.msra.mxu0 %v673
    %1384 = vmatprep.subr.mxu0 0.0
    %1385 = vmatpush1.msra.mxu0 %v674
    %1386 = vmatprep.subr.mxu0 0.0
    %1387 = vmatpush1.msra.mxu0 %v675
    %1388 = vmatprep.subr.mxu0 0.0
    %1389 = vmatpush1.msra.mxu0 %v676
    %1390 = vmatprep.subr.mxu0 0.0
    %1391 = vmatpush1.msra.mxu0 %v677
    %1392 = vmatprep.subr.mxu0 0.0
    %1393 = vmatpush1.msra.mxu0 %v678
    %1394 = vmatprep.subr.mxu0 0.0
    %1395 = vmatpush1.msra.mxu0 %v679
    %1396 = vmatprep.subr.mxu0 0.0
    %1397 = vmatpush1.msra.mxu0 %v680
    %1398 = vmatprep.subr.mxu0 0.0
    %1399 = vmatpush1.msra.mxu0 %v681
    %1400 = vmatprep.subr.mxu0 0.0
    %1401 = vmatpush1.msra.mxu0 %v682
    %1402 = vmatprep.subr.mxu0 0.0
    %1403 = vmatpush1.msra.mxu0 %v683
    %1404 = vmatprep.subr.mxu0 0.0
    %1405 = vmatpush1.msra.mxu0 %v684
    %1406 = vmatprep.subr.mxu0 0.0
    %1407 = vmatpush1.msra.mxu0 %v685
    %1408 = vmatprep.subr.mxu0 0.0
    %1409 = vmatpush1.msra.mxu0 %v686
    %1410 = vmatprep.subr.mxu0 0.0
    %1411 = vmatpush1.msra.mxu0 %v687
    %1412 = vmatprep.subr.mxu0 0.0
    %1413 = vmatpush1.msra.mxu0 %v688
    %1414 = vmatprep.subr.mxu0 0.0
    %1415 = vmatpush1.msra.mxu0 %v689
    %1416 = vmatprep.subr.mxu0 0.0
    %1417 = vmatpush1.msra.mxu0 %v690
    %1418 = vmatprep.subr.mxu0 0.0
    %1419 = vmatpush1.msra.mxu0 %v691
    %1420 = vmatprep.subr.mxu0 0.0
    %1421 = vmatpush1.msra.mxu0 %v692
    %1422 = vmatprep.subr.mxu0 0.0
    %1423 = vmatpush1.msra.mxu0 %v693
    %1424 = vmatprep.subr.mxu0 0.0
    %1425 = vmatpush1.msra.mxu0 %v694
    %1426 = vmatprep.subr.mxu0 0.0
    %1427 = vmatpush1.msra.mxu0 %v695
    %1428 = vmatprep.subr.mxu0 0.0
    %1429 = vmatpush1.msra.mxu0 %v696
    %1430 = vmatprep.subr.mxu0 0.0
    %1431 = vmatpush1.msra.mxu0 %v697
    %1432 = vmatprep.mubr.f32.mxu0 %v861
    %1433 = vmatmul.mubr.f32.gmra.mrb[0].mxu0 %v36
    %v1434 = vpop.f32.mrb[0].mxu0
    %v1435 = vadd.f32 %v1365, %v1434
    %v1436 = vpop.f32.mrb[0].mxu0
    %1437 = vdwg.mxu0
    %1438 = vmatprep.subr.mxu0 0.0
    %1439 = vmatpush1.msra.mxu0 %v698
    %1440 = vmatprep.subr.mxu0 0.0
    %1441 = vmatpush1.msra.mxu0 %v699
    %1442 = vmatprep.subr.mxu0 0.0
    %1443 = vmatpush1.msra.mxu0 %v700
    %1444 = vmatprep.subr.mxu0 0.0
    %1445 = vmatpush1.msra.mxu0 %v701
    %1446 = vmatprep.subr.mxu0 0.0
    %1447 = vmatpush1.msra.mxu0 %v702
    %1448 = vmatprep.subr.mxu0 0.0
    %1449 = vmatpush1.msra.mxu0 %v703
    %1450 = vmatprep.subr.mxu0 0.0
    %1451 = vmatpush1.msra.mxu0 %v704
    %1452 = vmatprep.subr.mxu0 0.0
    %1453 = vmatpush1.msra.mxu0 %v705
    %1454 = vmatprep.subr.mxu0 0.0
    %1455 = vmatpush1.msra.mxu0 %v706
    %1456 = vmatprep.subr.mxu0 0.0
    %1457 = vmatpush1.msra.mxu0 %v707
    %1458 = vmatprep.subr.mxu0 0.0
    %1459 = vmatpush1.msra.mxu0 %v708
    %1460 = vmatprep.subr.mxu0 0.0
    %1461 = vmatpush1.msra.mxu0 %v709
    %1462 = vmatprep.subr.mxu0 0.0
    %1463 = vmatpush1.msra.mxu0 %v710
    %1464 = vmatprep.subr.mxu0 0.0
    %1465 = vmatpush1.msra.mxu0 %v711
    %1466 = vmatprep.subr.mxu0 0.0
    %1467 = vmatpush1.msra.mxu0 %v712
    %1468 = vmatprep.subr.mxu0 0.0
    %1469 = vmatpush1.msra.mxu0 %v713
    %1470 = vmatprep.subr.mxu0 0.0
    %1471 = vmatpush1.msra.mxu0 %v714
    %1472 = vmatprep.subr.mxu0 0.0
    %1473 = vmatpush1.msra.mxu0 %v715
    %1474 = vmatprep.subr.mxu0 0.0
    %1475 = vmatpush1.msra.mxu0 %v716
    %1476 = vmatprep.subr.mxu0 0.0
    %1477 = vmatpush1.msra.mxu0 %v717
    %1478 = vmatprep.subr.mxu0 0.0
    %1479 = vmatpush1.msra.mxu0 %v718
    %1480 = vmatprep.subr.mxu0 0.0
    %1481 = vmatpush1.msra.mxu0 %v719
    %1482 = vmatprep.subr.mxu0 0.0
    %1483 = vmatpush1.msra.mxu0 %v720
    %1484 = vmatprep.subr.mxu0 0.0
    %1485 = vmatpush1.msra.mxu0 %v721
    %1486 = vmatprep.subr.mxu0 0.0
    %1487 = vmatpush1.msra.mxu0 %v722
    %1488 = vmatprep.subr.mxu0 0.0
    %1489 = vmatpush1.msra.mxu0 %v723
    %1490 = vmatprep.subr.mxu0 0.0
    %1491 = vmatpush1.msra.mxu0 %v724
    %1492 = vmatprep.subr.mxu0 0.0
    %1493 = vmatpush1.msra.mxu0 %v725
    %1494 = vmatprep.subr.mxu0 0.0
    %1495 = vmatpush1.msra.mxu0 %v726
    %1496 = vmatprep.subr.mxu0 0.0
    %1497 = vmatpush1.msra.mxu0 %v727
    %1498 = vmatprep.subr.mxu0 0.0
    %1499 = vmatpush1.msra.mxu0 %v728
    %1500 = vmatprep.subr.mxu0 0.0
    %1501 = vmatpush1.msra.mxu0 %v729
    %1502 = vmatprep.mubr.f32.mxu0 %v862
    %1503 = vmatmul.mubr.f32.gmra.mrb[0].mxu0 %v37
    %v1504 = vpop.f32.mrb[0].mxu0
    %v1505 = vadd.f32 %v1435, %v1504
    %v1506 = vpop.f32.mrb[0].mxu0
    %1507 = vdwg.mxu0
    %1508 = vmatprep.subr.mxu0 0.0
    %1509 = vmatpush1.msra.mxu0 %v730
    %1510 = vmatprep.subr.mxu0 0.0
    %1511 = vmatpush1.msra.mxu0 %v731
    %1512 = vmatprep.subr.mxu0 0.0
    %1513 = vmatpush1.msra.mxu0 %v732
    %1514 = vmatprep.subr.mxu0 0.0
    %1515 = vmatpush1.msra.mxu0 %v733
    %1516 = vmatprep.subr.mxu0 0.0
    %1517 = vmatpush1.msra.mxu0 %v734
    %1518 = vmatprep.subr.mxu0 0.0
    %1519 = vmatpush1.msra.mxu0 %v735
    %1520 = vmatprep.subr.mxu0 0.0
    %1521 = vmatpush1.msra.mxu0 %v736
    %1522 = vmatprep.subr.mxu0 0.0
    %1523 = vmatpush1.msra.mxu0 %v737
    %1524 = vmatprep.subr.mxu0 0.0
    %1525 = vmatpush1.msra.mxu0 %v738
    %1526 = vmatprep.subr.mxu0 0.0
    %1527 = vmatpush1.msra.mxu0 %v739
    %1528 = vmatprep.subr.mxu0 0.0
    %1529 = vmatpush1.msra.mxu0 %v740
    %1530 = vmatprep.subr.mxu0 0.0
    %1531 = vmatpush1.msra.mxu0 %v741
    %1532 = vmatprep.subr.mxu0 0.0
    %1533 = vmatpush1.msra.mxu0 %v742
    %1534 = vmatprep.subr.mxu0 0.0
    %1535 = vmatpush1.msra.mxu0 %v743
    %1536 = vmatprep.subr.mxu0 0.0
    %1537 = vmatpush1.msra.mxu0 %v744
    %1538 = vmatprep.subr.mxu0 0.0
    %1539 = vmatpush1.msra.mxu0 %v745
    %1540 = vmatprep.subr.mxu0 0.0
    %1541 = vmatpush1.msra.mxu0 %v746
    %1542 = vmatprep.subr.mxu0 0.0
    %1543 = vmatpush1.msra.mxu0 %v747
    %1544 = vmatprep.subr.mxu0 0.0
    %1545 = vmatpush1.msra.mxu0 %v748
    %1546 = vmatprep.subr.mxu0 0.0
    %1547 = vmatpush1.msra.mxu0 %v749
    %1548 = vmatprep.subr.mxu0 0.0
    %1549 = vmatpush1.msra.mxu0 %v750
    %1550 = vmatprep.subr.mxu0 0.0
    %1551 = vmatpush1.msra.mxu0 %v751
    %1552 = vmatprep.subr.mxu0 0.0
    %1553 = vmatpush1.msra.mxu0 %v752
    %1554 = vmatprep.subr.mxu0 0.0
    %1555 = vmatpush1.msra.mxu0 %v753
    %1556 = vmatprep.subr.mxu0 0.0
    %1557 = vmatpush1.msra.mxu0 %v754
    %1558 = vmatprep.subr.mxu0 0.0
    %1559 = vmatpush1.msra.mxu0 %v755
    %1560 = vmatprep.subr.mxu0 0.0
    %1561 = vmatpush1.msra.mxu0 %v756
    %1562 = vmatprep.subr.mxu0 0.0
    %1563 = vmatpush1.msra.mxu0 %v757
    %1564 = vmatprep.subr.mxu0 0.0
    %1565 = vmatpush1.msra.mxu0 %v758
    %1566 = vmatprep.subr.mxu0 0.0
    %1567 = vmatpush1.msra.mxu0 %v759
    %1568 = vmatprep.subr.mxu0 0.0
    %1569 = vmatpush1.msra.mxu0 %v760
    %1570 = vmatprep.subr.mxu0 0.0
    %1571 = vmatpush1.msra.mxu0 %v761
    %1572 = vmatprep.mubr.f32.mxu0 %v863
    %1573 = vmatmul.mubr.f32.gmra.mrb[0].mxu0 %v38
    %v1574 = vpop.f32.mrb[0].mxu0
    %v1575 = vadd.f32 %v1505, %v1574
    %v1576 = vpop.f32.mrb[0].mxu0
    %1577 = vdwg.mxu0
    %1578 = vmatprep.subr.mxu0 0.0
    %1579 = vmatpush1.msra.mxu0 %v762
    %1580 = vmatprep.subr.mxu0 0.0
    %1581 = vmatpush1.msra.mxu0 %v763
    %1582 = vmatprep.subr.mxu0 0.0
    %1583 = vmatpush1.msra.mxu0 %v764
    %1584 = vmatprep.subr.mxu0 0.0
    %1585 = vmatpush1.msra.mxu0 %v765
    %1586 = vmatprep.subr.mxu0 0.0
    %1587 = vmatpush1.msra.mxu0 %v766
    %1588 = vmatprep.subr.mxu0 0.0
    %1589 = vmatpush1.msra.mxu0 %v767
    %1590 = vmatprep.subr.mxu0 0.0
    %1591 = vmatpush1.msra.mxu0 %v768
    %1592 = vmatprep.subr.mxu0 0.0
    %1593 = vmatpush1.msra.mxu0 %v769
    %1594 = vmatprep.subr.mxu0 0.0
    %1595 = vmatpush1.msra.mxu0 %v770
    %1596 = vmatprep.subr.mxu0 0.0
    %1597 = vmatpush1.msra.mxu0 %v771
    %1598 = vmatprep.subr.mxu0 0.0
    %1599 = vmatpush1.msra.mxu0 %v772
    %1600 = vmatprep.subr.mxu0 0.0
    %1601 = vmatpush1.msra.mxu0 %v773
    %1602 = vmatprep.subr.mxu0 0.0
    %1603 = vmatpush1.msra.mxu0 %v774
    %1604 = vmatprep.subr.mxu0 0.0
    %1605 = vmatpush1.msra.mxu0 %v775
    %1606 = vmatprep.subr.mxu0 0.0
    %1607 = vmatpush1.msra.mxu0 %v776
    %1608 = vmatprep.subr.mxu0 0.0
    %1609 = vmatpush1.msra.mxu0 %v777
    %1610 = vmatprep.subr.mxu0 0.0
    %1611 = vmatpush1.msra.mxu0 %v778
    %1612 = vmatprep.subr.mxu0 0.0
    %1613 = vmatpush1.msra.mxu0 %v779
    %1614 = vmatprep.subr.mxu0 0.0
    %1615 = vmatpush1.msra.mxu0 %v780
    %1616 = vmatprep.subr.mxu0 0.0
    %1617 = vmatpush1.msra.mxu0 %v781
    %1618 = vmatprep.subr.mxu0 0.0
    %1619 = vmatpush1.msra.mxu0 %v782
    %1620 = vmatprep.subr.mxu0 0.0
    %1621 = vmatpush1.msra.mxu0 %v783
    %1622 = vmatprep.subr.mxu0 0.0
    %1623 = vmatpush1.msra.mxu0 %v784
    %1624 = vmatprep.subr.mxu0 0.0
    %1625 = vmatpush1.msra.mxu0 %v785
    %1626 = vmatprep.subr.mxu0 0.0
    %1627 = vmatpush1.msra.mxu0 %v786
    %1628 = vmatprep.subr.mxu0 0.0
    %1629 = vmatpush1.msra.mxu0 %v787
    %1630 = vmatprep.subr.mxu0 0.0
    %1631 = vmatpush1.msra.mxu0 %v788
    %1632 = vmatprep.subr.mxu0 0.0
    %1633 = vmatpush1.msra.mxu0 %v789
    %1634 = vmatprep.subr.mxu0 0.0
    %1635 = vmatpush1.msra.mxu0 %v790
    %1636 = vmatprep.subr.mxu0 0.0
    %1637 = vmatpush1.msra.mxu0 %v791
    %1638 = vmatprep.subr.mxu0 0.0
    %1639 = vmatpush1.msra.mxu0 %v792
    %1640 = vmatprep.subr.mxu0 0.0
    %1641 = vmatpush1.msra.mxu0 %v793
    %1642 = vmatprep.mubr.f32.mxu0 %v864
    %1643 = vmatmul.mubr.f32.gmra.mrb[0].mxu0 %v39
    %v1644 = vpop.f32.mrb[0].mxu0
    %v1645 = vadd.f32 %v1575, %v1644
    %v1646 = vpop.f32.mrb[0].mxu0
    %1647 = vdwg.mxu0
    %1648 = vmatprep.subr.mxu0 0.0
    %1649 = vmatpush1.msra.mxu0 %v794
    %1650 = vmatprep.subr.mxu0 0.0
    %1651 = vmatpush1.msra.mxu0 %v795
    %1652 = vmatprep.subr.mxu0 0.0
    %1653 = vmatpush1.msra.mxu0 %v796
    %1654 = vmatprep.subr.mxu0 0.0
    %1655 = vmatpush1.msra.mxu0 %v797
    %1656 = vmatprep.subr.mxu0 0.0
    %1657 = vmatpush1.msra.mxu0 %v798
    %1658 = vmatprep.subr.mxu0 0.0
    %1659 = vmatpush1.msra.mxu0 %v799
    %1660 = vmatprep.subr.mxu0 0.0
    %1661 = vmatpush1.msra.mxu0 %v800
    %1662 = vmatprep.subr.mxu0 0.0
    %1663 = vmatpush1.msra.mxu0 %v801
    %1664 = vmatprep.subr.mxu0 0.0
    %1665 = vmatpush1.msra.mxu0 %v802
    %1666 = vmatprep.subr.mxu0 0.0
    %1667 = vmatpush1.msra.mxu0 %v803
    %1668 = vmatprep.subr.mxu0 0.0
    %1669 = vmatpush1.msra.mxu0 %v804
    %1670 = vmatprep.subr.mxu0 0.0
    %1671 = vmatpush1.msra.mxu0 %v805
    %1672 = vmatprep.subr.mxu0 0.0
    %1673 = vmatpush1.msra.mxu0 %v806
    %1674 = vmatprep.subr.mxu0 0.0
    %1675 = vmatpush1.msra.mxu0 %v807
    %1676 = vmatprep.subr.mxu0 0.0
    %1677 = vmatpush1.msra.mxu0 %v808
    %1678 = vmatprep.subr.mxu0 0.0
    %1679 = vmatpush1.msra.mxu0 %v809
    %1680 = vmatprep.subr.mxu0 0.0
    %1681 = vmatpush1.msra.mxu0 %v810
    %1682 = vmatprep.subr.mxu0 0.0
    %1683 = vmatpush1.msra.mxu0 %v811
    %1684 = vmatprep.subr.mxu0 0.0
    %1685 = vmatpush1.msra.mxu0 %v812
    %1686 = vmatprep.subr.mxu0 0.0
    %1687 = vmatpush1.msra.mxu0 %v813
    %1688 = vmatprep.subr.mxu0 0.0
    %1689 = vmatpush1.msra.mxu0 %v814
    %1690 = vmatprep.subr.mxu0 0.0
    %1691 = vmatpush1.msra.mxu0 %v815
    %1692 = vmatprep.subr.mxu0 0.0
    %1693 = vmatpush1.msra.mxu0 %v816
    %1694 = vmatprep.subr.mxu0 0.0
    %1695 = vmatpush1.msra.mxu0 %v817
    %1696 = vmatprep.subr.mxu0 0.0
    %1697 = vmatpush1.msra.mxu0 %v818
    %1698 = vmatprep.subr.mxu0 0.0
    %1699 = vmatpush1.msra.mxu0 %v819
    %1700 = vmatprep.subr.mxu0 0.0
    %1701 = vmatpush1.msra.mxu0 %v820
    %1702 = vmatprep.subr.mxu0 0.0
    %1703 = vmatpush1.msra.mxu0 %v821
    %1704 = vmatprep.subr.mxu0 0.0
    %1705 = vmatpush1.msra.mxu0 %v822
    %1706 = vmatprep.subr.mxu0 0.0
    %1707 = vmatpush1.msra.mxu0 %v823
    %1708 = vmatprep.subr.mxu0 0.0
    %1709 = vmatpush1.msra.mxu0 %v824
    %1710 = vmatprep.subr.mxu0 0.0
    %1711 = vmatpush1.msra.mxu0 %v825
    %1712 = vmatprep.mubr.f32.mxu0 %v865
    %1713 = vmatmul.mubr.f32.gmra.mrb[0].mxu0 %v40
    %v1714 = vpop.f32.mrb[0].mxu0
    %v1715 = vadd.f32 %v1645, %v1714
    %v1716 = vpop.f32.mrb[0].mxu0
    %1717 = vdwg.mxu0
    %1718 = vmatprep.subr.mxu0 0.0
    %1719 = vmatpush1.msra.mxu0 %v826
    %1720 = vmatprep.subr.mxu0 0.0
    %1721 = vmatpush1.msra.mxu0 %v827
    %1722 = vmatprep.subr.mxu0 0.0
    %1723 = vmatpush1.msra.mxu0 %v828
    %1724 = vmatprep.subr.mxu0 0.0
    %1725 = vmatpush1.msra.mxu0 %v829
    %1726 = vmatprep.subr.mxu0 0.0
    %1727 = vmatpush1.msra.mxu0 %v830
    %1728 = vmatprep.subr.mxu0 0.0
    %1729 = vmatpush1.msra.mxu0 %v831
    %1730 = vmatprep.subr.mxu0 0.0
    %1731 = vmatpush1.msra.mxu0 %v832
    %1732 = vmatprep.subr.mxu0 0.0
    %1733 = vmatpush1.msra.mxu0 %v833
    %1734 = vmatprep.subr.mxu0 0.0
    %1735 = vmatpush1.msra.mxu0 %v834
    %1736 = vmatprep.subr.mxu0 0.0
    %1737 = vmatpush1.msra.mxu0 %v835
    %1738 = vmatprep.subr.mxu0 0.0
    %1739 = vmatpush1.msra.mxu0 %v836
    %1740 = vmatprep.subr.mxu0 0.0
    %1741 = vmatpush1.msra.mxu0 %v837
    %1742 = vmatprep.subr.mxu0 0.0
    %1743 = vmatpush1.msra.mxu0 %v838
    %1744 = vmatprep.subr.mxu0 0.0
    %1745 = vmatpush1.msra.mxu0 %v839
    %1746 = vmatprep.subr.mxu0 0.0
    %1747 = vmatpush1.msra.mxu0 %v840
    %1748 = vmatprep.subr.mxu0 0.0
    %1749 = vmatpush1.msra.mxu0 %v841
    %1750 = vmatprep.subr.mxu0 0.0
    %1751 = vmatpush1.msra.mxu0 0.0
    %1752 = vmatprep.subr.mxu0 0.0
    %1753 = vmatpush1.msra.mxu0 0.0
    %1754 = vmatprep.subr.mxu0 0.0
    %1755 = vmatpush1.msra.mxu0 0.0
    %1756 = vmatprep.subr.mxu0 0.0
    %1757 = vmatpush1.msra.mxu0 0.0
    %1758 = vmatprep.subr.mxu0 0.0
    %1759 = vmatpush1.msra.mxu0 0.0
    %1760 = vmatprep.subr.mxu0 0.0
    %1761 = vmatpush1.msra.mxu0 0.0
    %1762 = vmatprep.subr.mxu0 0.0
    %1763 = vmatpush1.msra.mxu0 0.0
    %1764 = vmatprep.subr.mxu0 0.0
    %1765 = vmatpush1.msra.mxu0 0.0
    %1766 = vmatprep.subr.mxu0 0.0
    %1767 = vmatpush1.msra.mxu0 0.0
    %1768 = vmatprep.subr.mxu0 0.0
    %1769 = vmatpush1.msra.mxu0 0.0
    %1770 = vmatprep.subr.mxu0 0.0
    %1771 = vmatpush1.msra.mxu0 0.0
    %1772 = vmatprep.subr.mxu0 0.0
    %1773 = vmatpush1.msra.mxu0 0.0
    %1774 = vmatprep.subr.mxu0 0.0
    %1775 = vmatpush1.msra.mxu0 0.0
    %1776 = vmatprep.subr.mxu0 0.0
    %1777 = vmatpush1.msra.mxu0 0.0
    %1778 = vmatprep.subr.mxu0 0.0
    %1779 = vmatpush1.msra.mxu0 0.0
    %1780 = vmatprep.subr.mxu0 0.0
    %1781 = vmatpush1.msra.mxu0 0.0
    %1782 = vmatprep.mubr.f32.mxu0 0.0
    %1783 = vmatmul.mubr.f32.gmra.mrb[0].mxu0 %v41
    %v1784 = vpop.f32.mrb[0].mxu0
    %v1785 = vadd.f32 %v1715, %v1784
    %v1786 = vpop.f32.mrb[0].mxu0
    %1787 = vdwg.mxu0
    %v1788 = vld [vmem:[%s2] sm:$0x1]
    %v1789 = vadd.f32 %v1788, %v1785
    %v1792 = vunpack.c.l.s4 1966171168
    %v1793 = vunpack.c.0.s8 %v1792
    %v1794 = vlaneseq
    %v1795 = vshrl.u32 %v1794, 7
    %v1796 = vsub.s32 %v1793, %v1795
    %v1797 = vrot.slane %v1785, %v1796
    %v1798 = vcombine.high %v1797, %v1797
    %v1800 = vunpack.c.l.s4 1966171168
    %v1801 = vunpack.c.0.s8 %v1800
    %v1802 = vlaneseq
    %v1803 = vshrl.u32 %v1802, 7
    %v1804 = vsub.s32 %v1801, %v1803
    %v1805 = vrot.slane %v1797, %v1804
    %v1807 = vunpack.c.l.s4 1966171168
    %v1808 = vunpack.c.0.s8 %v1807
    %v1809 = vlaneseq
    %v1810 = vshrl.u32 %v1809, 7
    %v1811 = vsub.s32 %v1808, %v1810
    %v1812 = vrot.slane %v1798, %v1811
    %1813 = vrot.lane.b32.xlu0 %v1812, 96
    %v1814 = vpop.permute.xlu0 %1813
    %v1816 = vadd.f32 %v1789, %v1814
    %v1817 = vcombine.high %v1805, %v1805
    %1818 = vrot.lane.b32.xlu0 %v1817, 64
    %v1819 = vpop.permute.xlu0 %1818
    %v1821 = vadd.f32 %v1816, %v1819
    %v1822 = vcombine.high %v1812, %v1812
    %1823 = vrot.lane.b32.xlu0 %v1822, 32
    %v1824 = vpop.permute.xlu0 %1823
    %v1826 = vadd.f32 %v1821, %v1824
    %v1827 = vmax.f32 %v1826, 0.0
    %v1828 = vld [vmem:[%s3] sm:$0xff]
    %v1829 = vld [vmem:[%s3 + $0x8] sm:$0xff]
    %v1830 = vld [vmem:[%s3 + $0x10] sm:$0xff]
    %v1831 = vld [vmem:[%s3 + $0x18] sm:$0xff]
    %v1832 = vld [vmem:[%s4] sm:$0x1]
    %vm1833 = vcmask 261120
    %v1835 = vsel %vm1833, %v1827, 0
    %1837 = vmatprep.subr.mxu0 0.0
    %1838 = vmatpush1.msra.mxu0 %v1828
    %1839 = vmatprep.subr.mxu0 0.0
    %1840 = vmatpush1.msra.mxu0 %v1829
    %1841 = vmatprep.subr.mxu0 0.0
    %1842 = vmatpush1.msra.mxu0 %v1830
    %1843 = vmatprep.subr.mxu0 0.0
    %1844 = vmatpush1.msra.mxu0 %v1831
    %1845 = vmatprep.subr.mxu0 0.0
    %1846 = vmatpush1.msra.mxu0 0.0
    %1847 = vmatprep.subr.mxu0 0.0
    %1848 = vmatpush1.msra.mxu0 0.0
    %1849 = vmatprep.subr.mxu0 0.0
    %1850 = vmatpush1.msra.mxu0 0.0
    %1851 = vmatprep.subr.mxu0 0.0
    %1852 = vmatpush1.msra.mxu0 0.0
    %1853 = vmatprep.subr.mxu0 0.0
    %1854 = vmatpush1.msra.mxu0 0.0
    %1855 = vmatprep.subr.mxu0 0.0
    %1856 = vmatpush1.msra.mxu0 0.0
    %1857 = vmatprep.subr.mxu0 0.0
    %1858 = vmatpush1.msra.mxu0 0.0
    %1859 = vmatprep.subr.mxu0 0.0
    %1860 = vmatpush1.msra.mxu0 0.0
    %1861 = vmatprep.subr.mxu0 0.0
    %1862 = vmatpush1.msra.mxu0 0.0
    %1863 = vmatprep.subr.mxu0 0.0
    %1864 = vmatpush1.msra.mxu0 0.0
    %1865 = vmatprep.subr.mxu0 0.0
    %1866 = vmatpush1.msra.mxu0 0.0
    %1867 = vmatprep.subr.mxu0 0.0
    %1868 = vmatpush1.msra.mxu0 0.0
    %1869 = vmatprep.subr.mxu0 0.0
    %1870 = vmatpush1.msra.mxu0 0.0
    %1871 = vmatprep.subr.mxu0 0.0
    %1872 = vmatpush1.msra.mxu0 0.0
    %1873 = vmatprep.subr.mxu0 0.0
    %1874 = vmatpush1.msra.mxu0 0.0
    %1875 = vmatprep.subr.mxu0 0.0
    %1876 = vmatpush1.msra.mxu0 0.0
    %1877 = vmatprep.subr.mxu0 0.0
    %1878 = vmatpush1.msra.mxu0 0.0
    %1879 = vmatprep.subr.mxu0 0.0
    %1880 = vmatpush1.msra.mxu0 0.0
    %1881 = vmatprep.subr.mxu0 0.0
    %1882 = vmatpush1.msra.mxu0 0.0
    %1883 = vmatprep.subr.mxu0 0.0
    %1884 = vmatpush1.msra.mxu0 0.0
    %1885 = vmatprep.subr.mxu0 0.0
    %1886 = vmatpush1.msra.mxu0 0.0
    %1887 = vmatprep.subr.mxu0 0.0
    %1888 = vmatpush1.msra.mxu0 0.0
    %1889 = vmatprep.subr.mxu0 0.0
    %1890 = vmatpush1.msra.mxu0 0.0
    %1891 = vmatprep.subr.mxu0 0.0
    %1892 = vmatpush1.msra.mxu0 0.0
    %1893 = vmatprep.subr.mxu0 0.0
    %1894 = vmatpush1.msra.mxu0 0.0
    %1895 = vmatprep.subr.mxu0 0.0
    %1896 = vmatpush1.msra.mxu0 0.0
    %1897 = vmatprep.subr.mxu0 0.0
    %1898 = vmatpush1.msra.mxu0 0.0
    %1899 = vmatprep.subr.mxu0 0.0
    %1900 = vmatpush1.msra.mxu0 0.0
    %1901 = vmatprep.mubr.f32.mxu0 0.0
    %1902 = vmatmul.mubr.f32.gmra.mrb[0].mxu0 %v1835
    %v1903 = vpop.f32.mrb[0].mxu0
    %v1904 = vadd.f32 %v1832, %v1903
    %v1905 = vpop.f32.mrb[0].mxu0
    %1906 = vdwg.mxu0
    %v1907 = vmax.f32 %v1904, 0.0
    %v1908 = vld [vmem:[%s5] sm:$0xff]
    %v1909 = vld [vmem:[%s5 + $0x8] sm:$0xff]
    %v1910 = vld [vmem:[%s5 + $0x10] sm:$0xff]
    %v1911 = vld [vmem:[%s5 + $0x18] sm:$0xff]
    %v1912 = vld [vmem:[#allocation2] sm:$0x1]
    %v1914 = vsel %vm1833, %v1907, 0
    %1916 = vmatprep.subr.mxu0 0.0
    %1917 = vmatpush1.msra.mxu0 %v1908
    %1918 = vmatprep.subr.mxu0 0.0
    %1919 = vmatpush1.msra.mxu0 %v1909
    %1920 = vmatprep.subr.mxu0 0.0
    %1921 = vmatpush1.msra.mxu0 %v1910
    %1922 = vmatprep.subr.mxu0 0.0
    %1923 = vmatpush1.msra.mxu0 %v1911
    %1924 = vmatprep.subr.mxu0 0.0
    %1925 = vmatpush1.msra.mxu0 0.0
    %1926 = vmatprep.subr.mxu0 0.0
    %1927 = vmatpush1.msra.mxu0 0.0
    %1928 = vmatprep.subr.mxu0 0.0
    %1929 = vmatpush1.msra.mxu0 0.0
    %1930 = vmatprep.subr.mxu0 0.0
    %1931 = vmatpush1.msra.mxu0 0.0
    %1932 = vmatprep.subr.mxu0 0.0
    %1933 = vmatpush1.msra.mxu0 0.0
    %1934 = vmatprep.subr.mxu0 0.0
    %1935 = vmatpush1.msra.mxu0 0.0
    %1936 = vmatprep.subr.mxu0 0.0
    %1937 = vmatpush1.msra.mxu0 0.0
    %1938 = vmatprep.subr.mxu0 0.0
    %1939 = vmatpush1.msra.mxu0 0.0
    %1940 = vmatprep.subr.mxu0 0.0
    %1941 = vmatpush1.msra.mxu0 0.0
    %1942 = vmatprep.subr.mxu0 0.0
    %1943 = vmatpush1.msra.mxu0 0.0
    %1944 = vmatprep.subr.mxu0 0.0
    %1945 = vmatpush1.msra.mxu0 0.0
    %1946 = vmatprep.subr.mxu0 0.0
    %1947 = vmatpush1.msra.mxu0 0.0
    %1948 = vmatprep.subr.mxu0 0.0
    %1949 = vmatpush1.msra.mxu0 0.0
    %1950 = vmatprep.subr.mxu0 0.0
    %1951 = vmatpush1.msra.mxu0 0.0
    %1952 = vmatprep.subr.mxu0 0.0
    %1953 = vmatpush1.msra.mxu0 0.0
    %1954 = vmatprep.subr.mxu0 0.0
    %1955 = vmatpush1.msra.mxu0 0.0
    %1956 = vmatprep.subr.mxu0 0.0
    %1957 = vmatpush1.msra.mxu0 0.0
    %1958 = vmatprep.subr.mxu0 0.0
    %1959 = vmatpush1.msra.mxu0 0.0
    %1960 = vmatprep.subr.mxu0 0.0
    %1961 = vmatpush1.msra.mxu0 0.0
    %1962 = vmatprep.subr.mxu0 0.0
    %1963 = vmatpush1.msra.mxu0 0.0
    %1964 = vmatprep.subr.mxu0 0.0
    %1965 = vmatpush1.msra.mxu0 0.0
    %1966 = vmatprep.subr.mxu0 0.0
    %1967 = vmatpush1.msra.mxu0 0.0
    %1968 = vmatprep.subr.mxu0 0.0
    %1969 = vmatpush1.msra.mxu0 0.0
    %1970 = vmatprep.subr.mxu0 0.0
    %1971 = vmatpush1.msra.mxu0 0.0
    %1972 = vmatprep.subr.mxu0 0.0
    %1973 = vmatpush1.msra.mxu0 0.0
    %1974 = vmatprep.subr.mxu0 0.0
    %1975 = vmatpush1.msra.mxu0 0.0
    %1976 = vmatprep.subr.mxu0 0.0
    %1977 = vmatpush1.msra.mxu0 0.0
    %1978 = vmatprep.subr.mxu0 0.0
    %1979 = vmatpush1.msra.mxu0 0.0
    %1980 = vmatprep.mubr.f32.mxu0 0.0
    %1981 = vmatmul.mubr.f32.gmra.mrb[0].mxu0 %v1914
    %v1982 = vpop.f32.mrb[0].mxu0
    %v1983 = vadd.f32 %v1912, %v1982
    %v1984 = vpop.f32.mrb[0].mxu0
    %1985 = vdwg.mxu0
    %v1986 = vxor.u32 %v1983, 2147483648
    %v1987 = vmul.f32 %v1986, 1.442695
    %v1988 = vpow.pop %v1987
    %v1989 = vadd.f32 %v1988, 1.0
    %v1990 = vrcp.pop %v1989
    %v1991 = vmul.f32 1.0, %v1990
    %vm1992 = vcmask 0
    %1993 = vst.msk [vmem:[#allocation3] sm:$0x1] %vm1992, %v1991
    // Predicated region
    $region30: #{card_interaction_net.1} parent=1 // pred_check
      _
    $region31: #{card_interaction_net.1} parent=1 // pred_check_branch
      %1995 = sbr.rel (0) target = $region33
    $region32: #{card_interaction_net.1} parent=1 // pred_region
      %s1997 = ssub.s32 16, 16
      %1998 = vsyncadd [#allocation4], %s1997
      %s2000 = sshll.u32 [#allocation3], 4
      %s2001 = int_to_ptr.vmem [resolvable:$true] %s2000
      %2003 = dma.vmem_to_hbm [thread:$0]  %s2001, 16, %s7, [#allocation4]
    $region33: #{card_interaction_net.1} parent=1 // pred_fallthru
      _
    // Predicated region
    $region34: #{card_interaction_net.1} parent=1 // pred_check
      _
    $region35: #{card_interaction_net.1} parent=1 // pred_check_branch
      %2005 = sbr.rel (0) target = $region37
    $region36: #{card_interaction_net.1} parent=1 // pred_region
      %2006 = dma.done [#allocation4], 16
    $region37: #{card_interaction_net.1} parent=1 // pred_fallthru
      _
    %2007 = vsyncpa [#allocation4], 1

</llo_original>
